<compile_context>
chip_gen: v7x
topology: tpu7x:2x2x1
jax: 0.10.0
libtpu: 0.0.40
codegen_flags: <defaults>
</compile_context>

<pallas_src>
import functools
import math

import jax
import jax.numpy as jnp
import numpy as np
from jax.experimental import pallas as pl
from jax.experimental.pallas import tpu as pltpu

EPS = 1e-5            # nn.BatchNorm1d default eps
LANE = 128


def _round_up(x, m):
    return (x + m - 1) // m * m


# --------------------------- roll-direction probe -----------------------------
_ROLL_FWD_CACHE = []


def _roll_direction():
    """True  -> pltpu.roll(x, +1, axis=0) matches jnp.roll (rows move to higher
                indices);
       False -> opposite direction;
       None  -> probe failed; fall back to slice+concat shifts."""
    if not _ROLL_FWD_CACHE:
        fwd = None
        try:
            def probe(x_ref, o_ref):
                o_ref[...] = pltpu.roll(x_ref[...], 1, 0)

            x = (jnp.arange(8, dtype=jnp.float32)[:, None]
                 * jnp.ones((1, LANE), jnp.float32))
            y = pl.pallas_call(
                probe, out_shape=jax.ShapeDtypeStruct((8, LANE), jnp.float32))(x)
            yn = np.asarray(jax.device_get(y))
            xn = np.asarray(jax.device_get(x))
            if np.array_equal(yn, np.roll(xn, 1, axis=0)):
                fwd = True
            elif np.array_equal(yn, np.roll(xn, -1, axis=0)):
                fwd = False
        except Exception:
            fwd = None
        _ROLL_FWD_CACHE.append(fwd)
    return _ROLL_FWD_CACHE[0]


# ------------------------------ kernel helpers --------------------------------
def _shift_rows(t, down, l, roll_fwd):
    """Shift rows of t (R = nb*l, C) by one within each length-l segment.

    down=True : result[r] = t[r-1] (first row of each segment zeroed)
    down=False: result[r] = t[r+1] (last  row of each segment zeroed)
    """
    r = t.shape[0]
    idx = jax.lax.broadcasted_iota(jnp.int32, (r, 1), 0)
    pos = idx % l
    if roll_fwd is None:                      # safe fallback: slice + concat
        zrow = jnp.zeros((1, t.shape[1]), t.dtype)
        rolled = (jnp.concatenate([zrow, t[:-1]], axis=0) if down
                  else jnp.concatenate([t[1:], zrow], axis=0))
    else:                                     # XLU rotate (free slot vs. VPU/ld-st)
        if roll_fwd:
            shift = 1 if down else r - 1
        else:
            shift = r - 1 if down else 1
        rolled = pltpu.roll(t, shift, 0)
    keep = (pos != 0) if down else (pos != l - 1)
    return jnp.where(keep, rolled, 0.0)


def _conv3(x2d, w_ref, l, roll_fwd):
    """k=3, pad=1 conv as three MXU matmuls + row shifts (no im2col copy).

    x2d: (nb*l, Cin); w_ref: (3, Cin, Cout) with tap k applied to x[l-1+k].
    """
    y = jnp.dot(x2d, w_ref[1], preferred_element_type=jnp.float32)
    t = jnp.dot(x2d, w_ref[0], preferred_element_type=jnp.float32)
    y = y + _shift_rows(t, True, l, roll_fwd)        # x[l-1] tap
    t = jnp.dot(x2d, w_ref[2], preferred_element_type=jnp.float32)
    y = y + _shift_rows(t, False, l, roll_fwd)       # x[l+1] tap
    return y


def _partial_stats(y2d):
    """(R, C) f32 -> (2, C): [sum, centred second moment] for Chan's combine."""
    s = jnp.sum(y2d, axis=0, keepdims=True)
    m = s * (1.0 / y2d.shape[0])
    d = y2d - m
    return jnp.concatenate([s, jnp.sum(d * d, axis=0, keepdims=True)], axis=0)


# ---------------------------------- kernels -----------------------------------
def _pass1_kernel(has_shortcut, roll_fwd, *refs):
    # conv1 (+ optional 1x1 shortcut conv) + per-block BN partial statistics.
    if has_shortcut:
        x_ref, w1_ref, ws_ref, y1_ref, sc_ref, st1_ref, sts_ref = refs
    else:
        x_ref, w1_ref, y1_ref, st1_ref = refs
    nb, l, cin = x_ref.shape
    x2d = x_ref[...].reshape(nb * l, cin)
    y1 = _conv3(x2d, w1_ref, l, roll_fwd)
    y1_ref[...] = y1.reshape(y1_ref.shape).astype(y1_ref.dtype)
    st1_ref[0] = _partial_stats(y1)
    if has_shortcut:
        sc = jnp.dot(x2d, ws_ref[...], preferred_element_type=jnp.float32)
        sc_ref[...] = sc.reshape(sc_ref.shape).astype(sc_ref.dtype)
        sts_ref[0] = _partial_stats(sc)


def _pass2_kernel(roll_fwd, y1_ref, a1_ref, w2_ref, y2_ref, st2_ref):
    # Folded BN1 affine + ReLU, then conv2, + BN2 partial statistics.
    nb, l, c = y1_ref.shape
    a1 = a1_ref[...]                                        # (1, 2, C) f32
    y1 = y1_ref[...].astype(jnp.float32).reshape(nb * l, c)
    out1 = jnp.maximum(y1 * a1[0, 0:1, :] + a1[0, 1:2, :], 0.0)
    y2 = _conv3(out1.astype(w2_ref.dtype), w2_ref, l, roll_fwd)
    y2_ref[...] = y2.reshape(y2_ref.shape).astype(y2_ref.dtype)
    st2_ref[0] = _partial_stats(y2)


def _pass3_kernel(has_shortcut, *refs):
    # BN2 affine + (shortcut BN affine) + residual add + ReLU.
    if has_shortcut:
        y2_ref, sc_ref, a2_ref, as_ref, o_ref = refs
    else:
        y2_ref, sc_ref, a2_ref, o_ref = refs
    a2 = a2_ref[...]
    out = y2_ref[...].astype(jnp.float32) * a2[:, 0:1, :] + a2[:, 1:2, :]
    sc = sc_ref[...].astype(jnp.float32)
    if has_shortcut:
        a_s = as_ref[...]
        sc = sc * a_s[:, 0:1, :] + a_s[:, 1:2, :]
    o_ref[...] = jnp.maximum(out + sc, 0.0).astype(o_ref.dtype)


# ----------------------------- wrapper-side helpers ----------------------------
def _bn_affine(stats, rows_per_block, gamma, beta, c_pad):
    """Combine per-block [sum, centred M2] with Chan's formula and fold BN
    into a (1, 2, Cp) [scale; shift] tensor."""
    n_total = stats.shape[0] * rows_per_block
    sums, m2s = stats[:, 0, :], stats[:, 1, :]
    mean = jnp.sum(sums, axis=0) / n_total
    bmeans = sums / rows_per_block
    m2 = jnp.sum(m2s, axis=0) + rows_per_block * jnp.sum(
        (bmeans - mean[None, :]) ** 2, axis=0)
    var = jnp.maximum(m2 / n_total, 0.0)        # biased var, as PyTorch fwd uses
    g = jnp.pad(gamma.astype(jnp.float32), (0, c_pad - gamma.shape[0]))
    b = jnp.pad(beta.astype(jnp.float32), (0, c_pad - beta.shape[0]))
    scale = g * jax.lax.rsqrt(var + EPS)
    shift = b - mean * scale
    return jnp.stack([scale, shift], axis=0)[None].astype(jnp.float32)


def _stack_w3(w, ci_p, co_p, dtype):
    """PyTorch conv weight (Cout, Cin, 3) -> (3, Cin_p, Cout_p) tap slabs."""
    co, ci, _ = w.shape
    wt = jnp.transpose(w, (2, 1, 0))
    wt = jnp.pad(wt, ((0, 0), (0, ci_p - ci), (0, co_p - co)))
    return wt.astype(dtype)


@functools.lru_cache(maxsize=1)
def _device_config():
    """(vmem_limit_bytes, prefer_bf16), chosen per TPU generation."""
    kind = ""
    try:
        kind = jax.devices()[0].device_kind.lower()
    except Exception:
        pass
    vmem_cap = None
    try:
        vmem_cap = int(pltpu.get_tpu_info().vmem_capacity_bytes)
    except Exception:
        pass
    if vmem_cap is None:
        small = ("v7" in kind) or ("7x" in kind)
        vmem_cap = (64 if small else 128) * 1024 * 1024
    vmem_limit = min(int(vmem_cap * 0.72), 100 * 1024 * 1024)
    prefer_bf16 = any(t in kind for t in ("v5", "v6", "v7", "7x"))
    return vmem_limit, prefer_bf16


def _pick_batch_block(n, l, cin_p, cout_p, itemsize, vmem_budget):
    """Largest batch block whose per-step working set fits the VMEM budget;
    stop growing once the MXU M-tile is well filled if that keeps >=2 grid
    steps (feeds both v7x TensorCores)."""
    best = 1
    for nb in range(1, n + 1):
        if n % nb:
            continue
        rows = nb * l
        est = (2 * rows * (cin_p + 2 * cout_p) * itemsize   # double-buffered blocks
               + 8 * cin_p * cout_p * itemsize              # conv taps + shortcut wts
               + 4 * rows * cout_p * 4)                     # f32 matmul/shift temps
        if est > vmem_budget:
            break
        if best * l >= 512 and n // nb < 2:
            break
        best = nb
    return best


# ------------------------------------ impl ------------------------------------
@functools.partial(jax.jit, static_argnames=(
    "compute_dtype", "batch_block", "vmem_limit_bytes", "roll_fwd"))
def _residual_block_impl(x, params, *, compute_dtype, batch_block,
                         vmem_limit_bytes, roll_fwd):
    cdt = compute_dtype
    n, cin, l = x.shape
    cout = params["w1"].shape[0]
    has_shortcut = "ws" in params
    cin_p, cout_p = _round_up(cin, LANE), _round_up(cout, LANE)
    nb = batch_block
    g = n // nb

    # NCL -> NLC + lane-pad channels (single fused XLA transpose+pad under jit).
    # TODO(synk): fuse this transpose into pass 1 / emit NCL from pass 3 when
    # the surrounding graph is NCL-bound.
    x_nlc = jnp.pad(jnp.transpose(x, (0, 2, 1)),
                    ((0, 0), (0, 0), (0, cin_p - cin))).astype(cdt)
    w1_s = _stack_w3(params["w1"], cin_p, cout_p, cdt)
    w2_s = _stack_w3(params["w2"], cout_p, cout_p, cdt)

    cparams = pltpu.CompilerParams(
        dimension_semantics=("parallel",),
        vmem_limit_bytes=vmem_limit_bytes)

    tile3 = lambda i: (i, 0, 0)
    const3 = lambda i: (0, 0, 0)
    const2 = lambda i: (0, 0)
    x_spec = pl.BlockSpec((nb, l, cin_p), tile3)
    act_spec = pl.BlockSpec((nb, l, cout_p), tile3)
    stat_spec = pl.BlockSpec((1, 2, cout_p), tile3)
    aff_spec = pl.BlockSpec((1, 2, cout_p), const3)
    act_shape = jax.ShapeDtypeStruct((n, l, cout_p), cdt)
    stat_shape = jax.ShapeDtypeStruct((g, 2, cout_p), jnp.float32)

    # ---- pass 1: conv1 (+ 1x1 shortcut conv) + BN partial statistics --------
    if has_shortcut:
        ws_p = jnp.pad(jnp.transpose(params["ws"], (1, 0)),
                       ((0, cin_p - cin), (0, cout_p - cout))).astype(cdt)
        y1, sc, st1, sts = pl.pallas_call(
            functools.partial(_pass1_kernel, True, roll_fwd),
            grid_spec=pltpu.PrefetchScalarGridSpec(
                num_scalar_prefetch=0, grid=(g,),
                in_specs=[x_spec,
                          pl.BlockSpec((3, cin_p, cout_p), const3),
                          pl.BlockSpec((cin_p, cout_p), const2)],
                out_specs=[act_spec, act_spec, stat_spec, stat_spec]),
            out_shape=[act_shape, act_shape, stat_shape, stat_shape],
            compiler_params=cparams,
        )(x_nlc, w1_s, ws_p)
    else:
        y1, st1 = pl.pallas_call(
            functools.partial(_pass1_kernel, False, roll_fwd),
            grid_spec=pltpu.PrefetchScalarGridSpec(
                num_scalar_prefetch=0, grid=(g,),
                in_specs=[x_spec, pl.BlockSpec((3, cin_p, cout_p), const3)],
                out_specs=[act_spec, stat_spec]),
            out_shape=[act_shape, stat_shape],
            compiler_params=cparams,
        )(x_nlc, w1_s)
        sc, sts = x_nlc, None     # identity shortcut: pass 3 reads x directly

    a1 = _bn_affine(st1, nb * l, params["g1"], params["be1"], cout_p)

    # ---- pass 2: BN1 affine + ReLU + conv2 + BN2 partial statistics ---------
    y2, st2 = pl.pallas_call(
        functools.partial(_pass2_kernel, roll_fwd),
        grid_spec=pltpu.PrefetchScalarGridSpec(
            num_scalar_prefetch=0, grid=(g,),
            in_specs=[act_spec, aff_spec,
                      pl.BlockSpec((3, cout_p, cout_p), const3)],
            out_specs=[act_spec, stat_spec]),
        out_shape=[act_shape, stat_shape],
        compiler_params=cparams,
        input_output_aliases={0: 0},          # reuse y1's HBM buffer for y2
    )(y1, a1, w2_s)

    a2 = _bn_affine(st2, nb * l, params["g2"], params["be2"], cout_p)

    # ---- pass 3: BN2 + shortcut BN + residual add + ReLU ---------------------
    inputs3 = [y2, sc, a2]
    in_specs3 = [act_spec, act_spec, aff_spec]
    if has_shortcut:
        inputs3.append(_bn_affine(sts, nb * l, params["gs"], params["bes"],
                                  cout_p))
        in_specs3.append(aff_spec)
    out_nlc = pl.pallas_call(
        functools.partial(_pass3_kernel, has_shortcut),
        grid_spec=pltpu.PrefetchScalarGridSpec(
            num_scalar_prefetch=0, grid=(g,),
            in_specs=in_specs3, out_specs=act_spec),
        out_shape=jax.ShapeDtypeStruct((n, l, cout_p), jnp.float32),
        compiler_params=cparams,
        input_output_aliases=({0: 0} if cdt == jnp.float32 else {}),
    )(*inputs3)

    return jnp.transpose(out_nlc[:, :, :cout], (0, 2, 1))


def residual_block(x, params, *, compute_dtype=None, batch_block=None):
    """x: (N, C_in, L) float32 in PyTorch NCL layout -> (N, C_out, L) float32."""
    vmem_limit, prefer_bf16 = _device_config()
    if compute_dtype is None:      # bf16 MXU inputs by default on v5e/v6e/v7x
        compute_dtype = jnp.bfloat16 if prefer_bf16 else jnp.float32
    compute_dtype = np.dtype(compute_dtype)
    n, cin, l = x.shape
    cout = params["w1"].shape[0]
    cin_p, cout_p = _round_up(cin, LANE), _round_up(cout, LANE)
    if batch_block is None:
        batch_block = _pick_batch_block(n, l, cin_p, cout_p,
                                        compute_dtype.itemsize, vmem_limit)
    if n % batch_block:
        batch_block = 1
    return _residual_block_impl(
        x, params,
        compute_dtype=compute_dtype,
        batch_block=int(batch_block),
        vmem_limit_bytes=int(vmem_limit),
        roll_fwd=_roll_direction())


# -------------------------- deterministic parameter init ----------------------
def init_params(key, in_channels, out_channels, kernel_size=3):
    keys = jax.random.split(key, 3)

    def conv_init(k, co, ci, ksz):   # PyTorch-style uniform(-1/sqrt(fan_in), .)
        bound = 1.0 / math.sqrt(ci * ksz)
        kw, kb = jax.random.split(k)
        w = jax.random.uniform(kw, (co, ci, ksz), jnp.float32, -bound, bound)
        b = jax.random.uniform(kb, (co,), jnp.float32, -bound, bound)
        return w, b

    w1, b1 = conv_init(keys[0], out_channels, in_channels, kernel_size)
    w2, b2 = conv_init(keys[1], out_channels, out_channels, kernel_size)
    ones = jnp.ones((out_channels,), jnp.float32)
    zeros = jnp.zeros((out_channels,), jnp.float32)
    params = dict(w1=w1, b1=b1, g1=ones, be1=zeros,
                  w2=w2, b2=b2, g2=ones, be2=zeros)
    if in_channels != out_channels:
        ws3, bs = conv_init(keys[2], out_channels, in_channels, 1)
        params.update(ws=ws3[:, :, 0], bs=bs, gs=ones, bes=zeros)
    return params


# -------------------------------- pure-JAX reference ---------------------------
def reference(x, params):
    has_shortcut = "ws" in params

    def conv1d(inp, w, b, pad):
        y = jax.lax.conv_general_dilated(
            inp, w, window_strides=(1,), padding=[(pad, pad)],
            dimension_numbers=("NCH", "OIH", "NCH"),
            precision=jax.lax.Precision.HIGHEST)
        return y + b[None, :, None]

    def bn(inp, g, be):
        mean = jnp.mean(inp, axis=(0, 2), keepdims=True)
        var = jnp.mean((inp - mean) ** 2, axis=(0, 2), keepdims=True)
        return ((inp - mean) / jnp.sqrt(var + EPS) * g[None, :, None]
                + be[None, :, None])

    out = jax.nn.relu(bn(conv1d(x, params["w1"], params["b1"], 1),
                         params["g1"], params["be1"]))
    out = bn(conv1d(out, params["w2"], params["b2"], 1),
             params["g2"], params["be2"])
    if has_shortcut:
        sc = bn(conv1d(x, params["ws"][:, :, None], params["bs"], 0),
                params["gs"], params["bes"])
    else:
        sc = x
    return jax.nn.relu(out + sc)


# ------------------------------------ main -------------------------------------
if __name__ == "__main__":
    N, C_IN, C_OUT, L = 2, 4, 8, 16
    key = jax.random.PRNGKey(0)
    k_x, k_p, k_p2 = jax.random.split(key, 3)
    x = jax.random.normal(k_x, (N, C_IN, L), jnp.float32)

    # Tolerances: 2e-2 for the f32 path (covers possible reduced-precision MXU
    # passes; structural errors post-BN are O(1)), 2e-1 for the bf16 path.

    # 1) projection-shortcut branch (C_in != C_out), f32 MXU path.
    params = init_params(k_p, C_IN, C_OUT)
    out = jax.block_until_ready(
        residual_block(x, params, compute_dtype=jnp.float32))
    ref = reference(x, params)
    assert out.shape == (N, C_OUT, L), out.shape
    err = float(jnp.max(jnp.abs(out - ref)))
    assert jnp.allclose(out, ref, rtol=2e-2, atol=2e-2), f"max_err={err}"

    # 2) identity-shortcut branch (C_in == C_out), f32.
    x_id = jax.random.normal(k_x, (N, C_OUT, L), jnp.float32)
    params_id = init_params(k_p2, C_OUT, C_OUT)
    out_id = jax.block_until_ready(
        residual_block(x_id, params_id, compute_dtype=jnp.float32))
    ref_id = reference(x_id, params_id)
    err_id = float(jnp.max(jnp.abs(out_id - ref_id)))
    assert jnp.allclose(out_id, ref_id, rtol=2e-2, atol=2e-2), f"max_err={err_id}"

    # 3) generation-default path (bf16 MXU inputs on v5e/v6e/v7x), loose check.
    out_auto = jax.block_until_ready(residual_block(x, params))
    err_auto = float(jnp.max(jnp.abs(out_auto - ref)))
    assert jnp.allclose(out_auto, ref, rtol=2e-1, atol=2e-1), f"max_err={err_auto}"

    print("KERNEL_OK")
</pallas_src>

<mosaic_0001>
module attributes {stable_mosaic.version = 11 : i64} {
  func.func @probe(%arg0: memref<8x128xf32, #tpu.memory_space<vmem>>, %arg1: memref<8x128xf32, #tpu.memory_space<vmem>>) attributes {dimension_semantics = [], scalar_prefetch = 0 : i64, scratch_operands = 0 : i64, tpu.core_type = #tpu.core_type<tc>} {
    %c0 = arith.constant 0 : index
    %c0_0 = arith.constant 0 : index
    %0 = vector.load %arg0[%c0, %c0_0] : memref<8x128xf32, #tpu.memory_space<vmem>>, vector<8x128xf32>
    %c1_i32 = arith.constant 1 : i32
    %1 = tpu.dynamic_rotate %0 by %c1_i32 dim 0 : vector<8x128xf32>, i32 -> vector<8x128xf32>
    %c0_1 = arith.constant 0 : index
    %c0_2 = arith.constant 0 : index
    %2 = vector.load %arg1[%c0_1, %c0_2] : memref<8x128xf32, #tpu.memory_space<vmem>>, vector<8x128xf32>
    tpu.vector_store %arg1[%c0_1, %c0_2], %1 {strides = array<i32>} : memref<8x128xf32, #tpu.memory_space<vmem>>, vector<8x128xf32>,
    return
  }
}

module attributes {stable_mosaic.version = 11 : i64} {
  func.func @_pass1_kernel(%arg0: i32, %arg1: memref<2x16x128xf32, #tpu.memory_space<vmem>>, %arg2: memref<3x128x128xf32, #tpu.memory_space<vmem>>, %arg3: memref<128x128xf32, #tpu.memory_space<vmem>>, %arg4: memref<2x16x128xf32, #tpu.memory_space<vmem>>, %arg5: memref<2x16x128xf32, #tpu.memory_space<vmem>>, %arg6: memref<1x2x128xf32, #tpu.memory_space<vmem>>, %arg7: memref<1x2x128xf32, #tpu.memory_space<vmem>>) attributes {dimension_semantics = [#tpu.dimension_semantics<parallel>], iteration_bounds = array<i64: 1>, scalar_prefetch = 0 : i64, scratch_operands = 0 : i64, tpu.core_type = #tpu.core_type<tc>, window_params = [{transform_indices = @transform_0, window_bounds = array<i64: 2, 16, 128>}, {pipeline_mode = #tpu.pipeline_mode<synchronous>, transform_indices = @transform_1, window_bounds = array<i64: 3, 128, 128>}, {pipeline_mode = #tpu.pipeline_mode<synchronous>, transform_indices = @transform_2, window_bounds = array<i64: 128, 128>}, {transform_indices = @transform_3, window_bounds = array<i64: 2, 16, 128>}, {transform_indices = @transform_4, window_bounds = array<i64: 2, 16, 128>}, {transform_indices = @transform_5, window_bounds = array<i64: 1, 2, 128>}, {transform_indices = @transform_6, window_bounds = array<i64: 1, 2, 128>}]} {
    %c0 = arith.constant 0 : index
    %c0_0 = arith.constant 0 : index
    %c0_1 = arith.constant 0 : index
    %0 = vector.load %arg1[%c0, %c0_0, %c0_1] : memref<2x16x128xf32, #tpu.memory_space<vmem>>, vector<2x16x128xf32>
    %1 = vector.shape_cast %0 : vector<2x16x128xf32> to vector<32x128xf32>
    %c1 = arith.constant 1 : index
    %c0_2 = arith.constant 0 : index
    %c0_3 = arith.constant 0 : index
    %2 = vector.load %arg2[%c1, %c0_2, %c0_3] : memref<3x128x128xf32, #tpu.memory_space<vmem>>, vector<1x128x128xf32>
    %3 = vector.shape_cast %2 : vector<1x128x128xf32> to vector<128x128xf32>
    %cst = arith.constant dense<0.000000e+00> : vector<32x128xf32>
    %4 = tpu.matmul %1, %3, %cst {dimension_numbers = #tpu.dot_dimension_numbers<[1], [0], [0], [1], [0, 0, 1, 1], [], []>} : vector<32x128xf32>, vector<128x128xf32>, vector<32x128xf32> -> vector<32x128xf32>
    %c0_4 = arith.constant 0 : index
    %c0_5 = arith.constant 0 : index
    %c0_6 = arith.constant 0 : index
    %5 = vector.load %arg2[%c0_4, %c0_5, %c0_6] : memref<3x128x128xf32, #tpu.memory_space<vmem>>, vector<1x128x128xf32>
    %6 = vector.shape_cast %5 : vector<1x128x128xf32> to vector<128x128xf32>
    %cst_7 = arith.constant dense<0.000000e+00> : vector<32x128xf32>
    %7 = tpu.matmul %1, %6, %cst_7 {dimension_numbers = #tpu.dot_dimension_numbers<[1], [0], [0], [1], [0, 0, 1, 1], [], []>} : vector<32x128xf32>, vector<128x128xf32>, vector<32x128xf32> -> vector<32x128xf32>
    %8 = tpu.iota {dimensions = array<i32: 0>} : vector<32x1xi32>
    %c16_i32 = arith.constant 16 : i32
    %c0_i32 = arith.constant 0 : i32
    %9 = arith.cmpi eq, %c16_i32, %c0_i32 : i32
    %c1_i32 = arith.constant 1 : i32
    %10 = arith.select %9, %c1_i32, %c16_i32 : i32
    %11 = vector.broadcast %10 : i32 to vector<32x1xi32>
    %12 = arith.remsi %8, %11 : vector<32x1xi32>
    %c0_i32_8 = arith.constant 0 : i32
    %13 = vector.broadcast %c0_i32_8 : i32 to vector<32x1xi32>
    %14 = arith.cmpi ne, %12, %13 : vector<32x1xi32>
    %c0_i32_9 = arith.constant 0 : i32
    %15 = vector.broadcast %c0_i32_9 : i32 to vector<32x1xi32>
    %16 = arith.cmpi slt, %12, %15 : vector<32x1xi32>
    %c0_i32_10 = arith.constant 0 : i32
    %17 = arith.cmpi slt, %10, %c0_i32_10 : i32
    %18 = vector.broadcast %17 : i1 to vector<32x1xi1>
    %19 = vector.broadcast %18 : vector<32x1xi1> to vector<32x1xi1>
    %20 = arith.xori %16, %19 : vector<32x1xi1>
    %21 = arith.andi %20, %14 : vector<32x1xi1>
    %22 = vector.broadcast %10 : i32 to vector<32x1xi32>
    %23 = arith.addi %12, %22 : vector<32x1xi32>
    %24 = arith.select %21, %23, %12 : vector<32x1xi1>, vector<32x1xi32>
    %cst_11 = arith.constant 0.000000e+00 : f32
    %25 = vector.broadcast %cst_11 : f32 to vector<1x128xf32>
    %26 = vector.extract_strided_slice %7 {offsets = [0, 0], sizes = [31, 128], strides = [1, 1]} : vector<32x128xf32> to vector<31x128xf32>
    %27 = tpu.concatenate %25, %26 in 0 : vector<1x128xf32>, vector<31x128xf32> -> vector<32x128xf32>
    %c0_i32_12 = arith.constant 0 : i32
    %28 = vector.broadcast %c0_i32_12 : i32 to vector<32x1xi32>
    %29 = arith.cmpi ne, %24, %28 : vector<32x1xi32>
    %cst_13 = arith.constant 0.000000e+00 : f32
    %30 = vector.shape_cast %29 : vector<32x1xi1> to vector<32x1xi1>
    %31 = vector.broadcast %30 : vector<32x1xi1> to vector<32x128xi1>
    %32 = vector.broadcast %cst_13 : f32 to vector<32x128xf32>
    %33 = arith.select %31, %27, %32 : vector<32x128xi1>, vector<32x128xf32>
    %34 = arith.addf %4, %33 : vector<32x128xf32>
    %c2 = arith.constant 2 : index
    %c0_14 = arith.constant 0 : index
    %c0_15 = arith.constant 0 : index
    %35 = vector.load %arg2[%c2, %c0_14, %c0_15] : memref<3x128x128xf32, #tpu.memory_space<vmem>>, vector<1x128x128xf32>
    %36 = vector.shape_cast %35 : vector<1x128x128xf32> to vector<128x128xf32>
    %cst_16 = arith.constant dense<0.000000e+00> : vector<32x128xf32>
    %37 = tpu.matmul %1, %36, %cst_16 {dimension_numbers = #tpu.dot_dimension_numbers<[1], [0], [0], [1], [0, 0, 1, 1], [], []>} : vector<32x128xf32>, vector<128x128xf32>, vector<32x128xf32> -> vector<32x128xf32>
    %38 = tpu.iota {dimensions = array<i32: 0>} : vector<32x1xi32>
    %c16_i32_17 = arith.constant 16 : i32
    %c0_i32_18 = arith.constant 0 : i32
    %39 = arith.cmpi eq, %c16_i32_17, %c0_i32_18 : i32
    %c1_i32_19 = arith.constant 1 : i32
    %40 = arith.select %39, %c1_i32_19, %c16_i32_17 : i32
    %41 = vector.broadcast %40 : i32 to vector<32x1xi32>
    %42 = arith.remsi %38, %41 : vector<32x1xi32>
    %c0_i32_20 = arith.constant 0 : i32
    %43 = vector.broadcast %c0_i32_20 : i32 to vector<32x1xi32>
    %44 = arith.cmpi ne, %42, %43 : vector<32x1xi32>
    %c0_i32_21 = arith.constant 0 : i32
    %45 = vector.broadcast %c0_i32_21 : i32 to vector<32x1xi32>
    %46 = arith.cmpi slt, %42, %45 : vector<32x1xi32>
    %c0_i32_22 = arith.constant 0 : i32
    %47 = arith.cmpi slt, %40, %c0_i32_22 : i32
    %48 = vector.broadcast %47 : i1 to vector<32x1xi1>
    %49 = vector.broadcast %48 : vector<32x1xi1> to vector<32x1xi1>
    %50 = arith.xori %46, %49 : vector<32x1xi1>
    %51 = arith.andi %50, %44 : vector<32x1xi1>
    %52 = vector.broadcast %40 : i32 to vector<32x1xi32>
    %53 = arith.addi %42, %52 : vector<32x1xi32>
    %54 = arith.select %51, %53, %42 : vector<32x1xi1>, vector<32x1xi32>
    %cst_23 = arith.constant 0.000000e+00 : f32
    %55 = vector.broadcast %cst_23 : f32 to vector<1x128xf32>
    %56 = vector.extract_strided_slice %37 {offsets = [1, 0], sizes = [31, 128], strides = [1, 1]} : vector<32x128xf32> to vector<31x128xf32>
    %57 = tpu.concatenate %56, %55 in 0 : vector<31x128xf32>, vector<1x128xf32> -> vector<32x128xf32>
    %c15_i32 = arith.constant 15 : i32
    %58 = vector.broadcast %c15_i32 : i32 to vector<32x1xi32>
    %59 = arith.cmpi ne, %54, %58 : vector<32x1xi32>
    %cst_24 = arith.constant 0.000000e+00 : f32
    %60 = vector.shape_cast %59 : vector<32x1xi1> to vector<32x1xi1>
    %61 = vector.broadcast %60 : vector<32x1xi1> to vector<32x128xi1>
    %62 = vector.broadcast %cst_24 : f32 to vector<32x128xf32>
    %63 = arith.select %61, %57, %62 : vector<32x128xi1>, vector<32x128xf32>
    %64 = arith.addf %34, %63 : vector<32x128xf32>
    %65 = vector.shape_cast %64 : vector<32x128xf32> to vector<2x16x128xf32>
    %c0_25 = arith.constant 0 : index
    %c0_26 = arith.constant 0 : index
    %c0_27 = arith.constant 0 : index
    %66 = vector.load %arg4[%c0_25, %c0_26, %c0_27] : memref<2x16x128xf32, #tpu.memory_space<vmem>>, vector<2x16x128xf32>
    tpu.vector_store %arg4[%c0_25, %c0_26, %c0_27], %65 {strides = array<i32>} : memref<2x16x128xf32, #tpu.memory_space<vmem>>, vector<2x16x128xf32>,
    %cst_28 = arith.constant dense<0.000000e+00> : vector<128xf32>
    %67 = vector.multi_reduction <add>, %64, %cst_28 [0] : vector<32x128xf32> to vector<128xf32>
    %68 = vector.shape_cast %67 : vector<128xf32> to vector<1x128xf32>
    %cst_29 = arith.constant 3.125000e-02 : f32
    %69 = vector.broadcast %cst_29 : f32 to vector<1x128xf32>
    %70 = arith.mulf %68, %69 : vector<1x128xf32>
    %71 = vector.broadcast %70 : vector<1x128xf32> to vector<32x128xf32>
    %72 = arith.subf %64, %71 : vector<32x128xf32>
    %73 = arith.mulf %72, %72 : vector<32x128xf32>
    %cst_30 = arith.constant dense<0.000000e+00> : vector<128xf32>
    %74 = vector.multi_reduction <add>, %73, %cst_30 [0] : vector<32x128xf32> to vector<128xf32>
    %75 = vector.shape_cast %74 : vector<128xf32> to vector<1x128xf32>
    %76 = tpu.concatenate %68, %75 in 0 : vector<1x128xf32>, vector<1x128xf32> -> vector<2x128xf32>
    %c0_31 = arith.constant 0 : index
    %c0_32 = arith.constant 0 : index
    %c0_33 = arith.constant 0 : index
    %77 = vector.load %arg6[%c0_31, %c0_32, %c0_33] : memref<1x2x128xf32, #tpu.memory_space<vmem>>, vector<1x2x128xf32>
    %78 = vector.shape_cast %77 : vector<1x2x128xf32> to vector<2x128xf32>
    %79 = vector.shape_cast %76 : vector<2x128xf32> to vector<1x2x128xf32>
    tpu.vector_store %arg6[%c0_31, %c0_32, %c0_33], %79 {strides = array<i32>} : memref<1x2x128xf32, #tpu.memory_space<vmem>>, vector<1x2x128xf32>,
    %c0_34 = arith.constant 0 : index
    %c0_35 = arith.constant 0 : index
    %80 = vector.load %arg3[%c0_34, %c0_35] : memref<128x128xf32, #tpu.memory_space<vmem>>, vector<128x128xf32>
    %cst_36 = arith.constant dense<0.000000e+00> : vector<32x128xf32>
    %81 = tpu.matmul %1, %80, %cst_36 {dimension_numbers = #tpu.dot_dimension_numbers<[1], [0], [0], [1], [0, 0, 1, 1], [], []>} : vector<32x128xf32>, vector<128x128xf32>, vector<32x128xf32> -> vector<32x128xf32>
    %82 = vector.shape_cast %81 : vector<32x128xf32> to vector<2x16x128xf32>
    %c0_37 = arith.constant 0 : index
    %c0_38 = arith.constant 0 : index
    %c0_39 = arith.constant 0 : index
    %83 = vector.load %arg5[%c0_37, %c0_38, %c0_39] : memref<2x16x128xf32, #tpu.memory_space<vmem>>, vector<2x16x128xf32>
    tpu.vector_store %arg5[%c0_37, %c0_38, %c0_39], %82 {strides = array<i32>} : memref<2x16x128xf32, #tpu.memory_space<vmem>>, vector<2x16x128xf32>,
    %cst_40 = arith.constant dense<0.000000e+00> : vector<128xf32>
    %84 = vector.multi_reduction <add>, %81, %cst_40 [0] : vector<32x128xf32> to vector<128xf32>
    %85 = vector.shape_cast %84 : vector<128xf32> to vector<1x128xf32>
    %cst_41 = arith.constant 3.125000e-02 : f32
    %86 = vector.broadcast %cst_41 : f32 to vector<1x128xf32>
    %87 = arith.mulf %85, %86 : vector<1x128xf32>
    %88 = vector.broadcast %87 : vector<1x128xf32> to vector<32x128xf32>
    %89 = arith.subf %81, %88 : vector<32x128xf32>
    %90 = arith.mulf %89, %89 : vector<32x128xf32>
    %cst_42 = arith.constant dense<0.000000e+00> : vector<128xf32>
    %91 = vector.multi_reduction <add>, %90, %cst_42 [0] : vector<32x128xf32> to vector<128xf32>
    %92 = vector.shape_cast %91 : vector<128xf32> to vector<1x128xf32>
    %93 = tpu.concatenate %85, %92 in 0 : vector<1x128xf32>, vector<1x128xf32> -> vector<2x128xf32>
    %c0_43 = arith.constant 0 : index
    %c0_44 = arith.constant 0 : index
    %c0_45 = arith.constant 0 : index
    %94 = vector.load %arg7[%c0_43, %c0_44, %c0_45] : memref<1x2x128xf32, #tpu.memory_space<vmem>>, vector<1x2x128xf32>
    %95 = vector.shape_cast %94 : vector<1x2x128xf32> to vector<2x128xf32>
    %96 = vector.shape_cast %93 : vector<2x128xf32> to vector<1x2x128xf32>
    tpu.vector_store %arg7[%c0_43, %c0_44, %c0_45], %96 {strides = array<i32>} : memref<1x2x128xf32, #tpu.memory_space<vmem>>, vector<1x2x128xf32>,
    return
  }
  func.func @transform_0(%arg0: i32) -> (i32, i32, i32) {
    %c0_i32 = arith.constant 0 : i32
    %c0_i32_0 = arith.constant 0 : i32
    %c0_i32_1 = arith.constant 0 : i32
    return %arg0, %c0_i32, %c0_i32_0 : i32, i32, i32
  }
  func.func @transform_1(%arg0: i32) -> (i32, i32, i32) {
    %c0_i32 = arith.constant 0 : i32
    %c0_i32_0 = arith.constant 0 : i32
    %c0_i32_1 = arith.constant 0 : i32
    %c0_i32_2 = arith.constant 0 : i32
    return %c0_i32, %c0_i32_0, %c0_i32_1 : i32, i32, i32
  }
  func.func @transform_2(%arg0: i32) -> (i32, i32) {
    %c0_i32 = arith.constant 0 : i32
    %c0_i32_0 = arith.constant 0 : i32
    %c0_i32_1 = arith.constant 0 : i32
    return %c0_i32, %c0_i32_0 : i32, i32
  }
  func.func @transform_3(%arg0: i32) -> (i32, i32, i32) {
    %c0_i32 = arith.constant 0 : i32
    %c0_i32_0 = arith.constant 0 : i32
    %c0_i32_1 = arith.constant 0 : i32
    return %arg0, %c0_i32, %c0_i32_0 : i32, i32, i32
  }
  func.func @transform_4(%arg0: i32) -> (i32, i32, i32) {
    %c0_i32 = arith.constant 0 : i32
    %c0_i32_0 = arith.constant 0 : i32
    %c0_i32_1 = arith.constant 0 : i32
    return %arg0, %c0_i32, %c0_i32_0 : i32, i32, i32
  }
  func.func @transform_5(%arg0: i32) -> (i32, i32, i32) {
    %c0_i32 = arith.constant 0 : i32
    %c0_i32_0 = arith.constant 0 : i32
    %c0_i32_1 = arith.constant 0 : i32
    return %arg0, %c0_i32, %c0_i32_0 : i32, i32, i32
  }
  func.func @transform_6(%arg0: i32) -> (i32, i32, i32) {
    %c0_i32 = arith.constant 0 : i32
    %c0_i32_0 = arith.constant 0 : i32
    %c0_i32_1 = arith.constant 0 : i32
    return %arg0, %c0_i32, %c0_i32_0 : i32, i32, i32
  }
}

module attributes {stable_mosaic.version = 11 : i64} {
  func.func @_pass2_kernel(%arg0: i32, %arg1: memref<2x16x128xf32, #tpu.memory_space<vmem>>, %arg2: memref<1x2x128xf32, #tpu.memory_space<vmem>>, %arg3: memref<3x128x128xf32, #tpu.memory_space<vmem>>, %arg4: memref<2x16x128xf32, #tpu.memory_space<vmem>>, %arg5: memref<1x2x128xf32, #tpu.memory_space<vmem>>) attributes {dimension_semantics = [#tpu.dimension_semantics<parallel>], iteration_bounds = array<i64: 1>, scalar_prefetch = 0 : i64, scratch_operands = 0 : i64, tpu.core_type = #tpu.core_type<tc>, window_params = [{transform_indices = @transform_0, window_bounds = array<i64: 2, 16, 128>}, {pipeline_mode = #tpu.pipeline_mode<synchronous>, transform_indices = @transform_1, window_bounds = array<i64: 1, 2, 128>}, {pipeline_mode = #tpu.pipeline_mode<synchronous>, transform_indices = @transform_2, window_bounds = array<i64: 3, 128, 128>}, {transform_indices = @transform_3, window_bounds = array<i64: 2, 16, 128>}, {transform_indices = @transform_4, window_bounds = array<i64: 1, 2, 128>}]} {
    %c0 = arith.constant 0 : index
    %c0_0 = arith.constant 0 : index
    %c0_1 = arith.constant 0 : index
    %0 = vector.load %arg2[%c0, %c0_0, %c0_1] : memref<1x2x128xf32, #tpu.memory_space<vmem>>, vector<1x2x128xf32>
    %c0_2 = arith.constant 0 : index
    %c0_3 = arith.constant 0 : index
    %c0_4 = arith.constant 0 : index
    %1 = vector.load %arg1[%c0_2, %c0_3, %c0_4] : memref<2x16x128xf32, #tpu.memory_space<vmem>>, vector<2x16x128xf32>
    %2 = vector.shape_cast %1 : vector<2x16x128xf32> to vector<32x128xf32>
    %3 = vector.extract_strided_slice %0 {offsets = [0, 0, 0], sizes = [1, 1, 128], strides = [1, 1, 1]} : vector<1x2x128xf32> to vector<1x1x128xf32>
    %4 = vector.shape_cast %3 : vector<1x1x128xf32> to vector<1x128xf32>
    %5 = vector.broadcast %4 : vector<1x128xf32> to vector<32x128xf32>
    %6 = arith.mulf %2, %5 : vector<32x128xf32>
    %7 = vector.extract_strided_slice %0 {offsets = [0, 1, 0], sizes = [1, 1, 128], strides = [1, 1, 1]} : vector<1x2x128xf32> to vector<1x1x128xf32>
    %8 = vector.shape_cast %7 : vector<1x1x128xf32> to vector<1x128xf32>
    %9 = vector.broadcast %8 : vector<1x128xf32> to vector<32x128xf32>
    %10 = arith.addf %6, %9 : vector<32x128xf32>
    %cst = arith.constant 0.000000e+00 : f32
    %11 = vector.broadcast %cst : f32 to vector<32x128xf32>
    %12 = arith.maximumf %10, %11 : vector<32x128xf32>
    %c1 = arith.constant 1 : index
    %c0_5 = arith.constant 0 : index
    %c0_6 = arith.constant 0 : index
    %13 = vector.load %arg3[%c1, %c0_5, %c0_6] : memref<3x128x128xf32, #tpu.memory_space<vmem>>, vector<1x128x128xf32>
    %14 = vector.shape_cast %13 : vector<1x128x128xf32> to vector<128x128xf32>
    %cst_7 = arith.constant dense<0.000000e+00> : vector<32x128xf32>
    %15 = tpu.matmul %12, %14, %cst_7 {dimension_numbers = #tpu.dot_dimension_numbers<[1], [0], [0], [1], [0, 0, 1, 1], [], []>} : vector<32x128xf32>, vector<128x128xf32>, vector<32x128xf32> -> vector<32x128xf32>
    %c0_8 = arith.constant 0 : index
    %c0_9 = arith.constant 0 : index
    %c0_10 = arith.constant 0 : index
    %16 = vector.load %arg3[%c0_8, %c0_9, %c0_10] : memref<3x128x128xf32, #tpu.memory_space<vmem>>, vector<1x128x128xf32>
    %17 = vector.shape_cast %16 : vector<1x128x128xf32> to vector<128x128xf32>
    %cst_11 = arith.constant dense<0.000000e+00> : vector<32x128xf32>
    %18 = tpu.matmul %12, %17, %cst_11 {dimension_numbers = #tpu.dot_dimension_numbers<[1], [0], [0], [1], [0, 0, 1, 1], [], []>} : vector<32x128xf32>, vector<128x128xf32>, vector<32x128xf32> -> vector<32x128xf32>
    %19 = tpu.iota {dimensions = array<i32: 0>} : vector<32x1xi32>
    %c16_i32 = arith.constant 16 : i32
    %c0_i32 = arith.constant 0 : i32
    %20 = arith.cmpi eq, %c16_i32, %c0_i32 : i32
    %c1_i32 = arith.constant 1 : i32
    %21 = arith.select %20, %c1_i32, %c16_i32 : i32
    %22 = vector.broadcast %21 : i32 to vector<32x1xi32>
    %23 = arith.remsi %19, %22 : vector<32x1xi32>
    %c0_i32_12 = arith.constant 0 : i32
    %24 = vector.broadcast %c0_i32_12 : i32 to vector<32x1xi32>
    %25 = arith.cmpi ne, %23, %24 : vector<32x1xi32>
    %c0_i32_13 = arith.constant 0 : i32
    %26 = vector.broadcast %c0_i32_13 : i32 to vector<32x1xi32>
    %27 = arith.cmpi slt, %23, %26 : vector<32x1xi32>
    %c0_i32_14 = arith.constant 0 : i32
    %28 = arith.cmpi slt, %21, %c0_i32_14 : i32
    %29 = vector.broadcast %28 : i1 to vector<32x1xi1>
    %30 = vector.broadcast %29 : vector<32x1xi1> to vector<32x1xi1>
    %31 = arith.xori %27, %30 : vector<32x1xi1>
    %32 = arith.andi %31, %25 : vector<32x1xi1>
    %33 = vector.broadcast %21 : i32 to vector<32x1xi32>
    %34 = arith.addi %23, %33 : vector<32x1xi32>
    %35 = arith.select %32, %34, %23 : vector<32x1xi1>, vector<32x1xi32>
    %cst_15 = arith.constant 0.000000e+00 : f32
    %36 = vector.broadcast %cst_15 : f32 to vector<1x128xf32>
    %37 = vector.extract_strided_slice %18 {offsets = [0, 0], sizes = [31, 128], strides = [1, 1]} : vector<32x128xf32> to vector<31x128xf32>
    %38 = tpu.concatenate %36, %37 in 0 : vector<1x128xf32>, vector<31x128xf32> -> vector<32x128xf32>
    %c0_i32_16 = arith.constant 0 : i32
    %39 = vector.broadcast %c0_i32_16 : i32 to vector<32x1xi32>
    %40 = arith.cmpi ne, %35, %39 : vector<32x1xi32>
    %cst_17 = arith.constant 0.000000e+00 : f32
    %41 = vector.shape_cast %40 : vector<32x1xi1> to vector<32x1xi1>
    %42 = vector.broadcast %41 : vector<32x1xi1> to vector<32x128xi1>
    %43 = vector.broadcast %cst_17 : f32 to vector<32x128xf32>
    %44 = arith.select %42, %38, %43 : vector<32x128xi1>, vector<32x128xf32>
    %45 = arith.addf %15, %44 : vector<32x128xf32>
    %c2 = arith.constant 2 : index
    %c0_18 = arith.constant 0 : index
    %c0_19 = arith.constant 0 : index
    %46 = vector.load %arg3[%c2, %c0_18, %c0_19] : memref<3x128x128xf32, #tpu.memory_space<vmem>>, vector<1x128x128xf32>
    %47 = vector.shape_cast %46 : vector<1x128x128xf32> to vector<128x128xf32>
    %cst_20 = arith.constant dense<0.000000e+00> : vector<32x128xf32>
    %48 = tpu.matmul %12, %47, %cst_20 {dimension_numbers = #tpu.dot_dimension_numbers<[1], [0], [0], [1], [0, 0, 1, 1], [], []>} : vector<32x128xf32>, vector<128x128xf32>, vector<32x128xf32> -> vector<32x128xf32>
    %49 = tpu.iota {dimensions = array<i32: 0>} : vector<32x1xi32>
    %c16_i32_21 = arith.constant 16 : i32
    %c0_i32_22 = arith.constant 0 : i32
    %50 = arith.cmpi eq, %c16_i32_21, %c0_i32_22 : i32
    %c1_i32_23 = arith.constant 1 : i32
    %51 = arith.select %50, %c1_i32_23, %c16_i32_21 : i32
    %52 = vector.broadcast %51 : i32 to vector<32x1xi32>
    %53 = arith.remsi %49, %52 : vector<32x1xi32>
    %c0_i32_24 = arith.constant 0 : i32
    %54 = vector.broadcast %c0_i32_24 : i32 to vector<32x1xi32>
    %55 = arith.cmpi ne, %53, %54 : vector<32x1xi32>
    %c0_i32_25 = arith.constant 0 : i32
    %56 = vector.broadcast %c0_i32_25 : i32 to vector<32x1xi32>
    %57 = arith.cmpi slt, %53, %56 : vector<32x1xi32>
    %c0_i32_26 = arith.constant 0 : i32
    %58 = arith.cmpi slt, %51, %c0_i32_26 : i32
    %59 = vector.broadcast %58 : i1 to vector<32x1xi1>
    %60 = vector.broadcast %59 : vector<32x1xi1> to vector<32x1xi1>
    %61 = arith.xori %57, %60 : vector<32x1xi1>
    %62 = arith.andi %61, %55 : vector<32x1xi1>
    %63 = vector.broadcast %51 : i32 to vector<32x1xi32>
    %64 = arith.addi %53, %63 : vector<32x1xi32>
    %65 = arith.select %62, %64, %53 : vector<32x1xi1>, vector<32x1xi32>
    %cst_27 = arith.constant 0.000000e+00 : f32
    %66 = vector.broadcast %cst_27 : f32 to vector<1x128xf32>
    %67 = vector.extract_strided_slice %48 {offsets = [1, 0], sizes = [31, 128], strides = [1, 1]} : vector<32x128xf32> to vector<31x128xf32>
    %68 = tpu.concatenate %67, %66 in 0 : vector<31x128xf32>, vector<1x128xf32> -> vector<32x128xf32>
    %c15_i32 = arith.constant 15 : i32
    %69 = vector.broadcast %c15_i32 : i32 to vector<32x1xi32>
    %70 = arith.cmpi ne, %65, %69 : vector<32x1xi32>
    %cst_28 = arith.constant 0.000000e+00 : f32
    %71 = vector.shape_cast %70 : vector<32x1xi1> to vector<32x1xi1>
    %72 = vector.broadcast %71 : vector<32x1xi1> to vector<32x128xi1>
    %73 = vector.broadcast %cst_28 : f32 to vector<32x128xf32>
    %74 = arith.select %72, %68, %73 : vector<32x128xi1>, vector<32x128xf32>
    %75 = arith.addf %45, %74 : vector<32x128xf32>
    %76 = vector.shape_cast %75 : vector<32x128xf32> to vector<2x16x128xf32>
    %c0_29 = arith.constant 0 : index
    %c0_30 = arith.constant 0 : index
    %c0_31 = arith.constant 0 : index
    %77 = vector.load %arg4[%c0_29, %c0_30, %c0_31] : memref<2x16x128xf32, #tpu.memory_space<vmem>>, vector<2x16x128xf32>
    tpu.vector_store %arg4[%c0_29, %c0_30, %c0_31], %76 {strides = array<i32>} : memref<2x16x128xf32, #tpu.memory_space<vmem>>, vector<2x16x128xf32>,
    %cst_32 = arith.constant dense<0.000000e+00> : vector<128xf32>
    %78 = vector.multi_reduction <add>, %75, %cst_32 [0] : vector<32x128xf32> to vector<128xf32>
    %79 = vector.shape_cast %78 : vector<128xf32> to vector<1x128xf32>
    %cst_33 = arith.constant 3.125000e-02 : f32
    %80 = vector.broadcast %cst_33 : f32 to vector<1x128xf32>
    %81 = arith.mulf %79, %80 : vector<1x128xf32>
    %82 = vector.broadcast %81 : vector<1x128xf32> to vector<32x128xf32>
    %83 = arith.subf %75, %82 : vector<32x128xf32>
    %84 = arith.mulf %83, %83 : vector<32x128xf32>
    %cst_34 = arith.constant dense<0.000000e+00> : vector<128xf32>
    %85 = vector.multi_reduction <add>, %84, %cst_34 [0] : vector<32x128xf32> to vector<128xf32>
    %86 = vector.shape_cast %85 : vector<128xf32> to vector<1x128xf32>
    %87 = tpu.concatenate %79, %86 in 0 : vector<1x128xf32>, vector<1x128xf32> -> vector<2x128xf32>
    %c0_35 = arith.constant 0 : index
    %c0_36 = arith.constant 0 : index
    %c0_37 = arith.constant 0 : index
    %88 = vector.load %arg5[%c0_35, %c0_36, %c0_37] : memref<1x2x128xf32, #tpu.memory_space<vmem>>, vector<1x2x128xf32>
    %89 = vector.shape_cast %88 : vector<1x2x128xf32> to vector<2x128xf32>
    %90 = vector.shape_cast %87 : vector<2x128xf32> to vector<1x2x128xf32>
    tpu.vector_store %arg5[%c0_35, %c0_36, %c0_37], %90 {strides = array<i32>} : memref<1x2x128xf32, #tpu.memory_space<vmem>>, vector<1x2x128xf32>,
    return
  }
  func.func @transform_0(%arg0: i32) -> (i32, i32, i32) {
    %c0_i32 = arith.constant 0 : i32
    %c0_i32_0 = arith.constant 0 : i32
    %c0_i32_1 = arith.constant 0 : i32
    return %arg0, %c0_i32, %c0_i32_0 : i32, i32, i32
  }
  func.func @transform_1(%arg0: i32) -> (i32, i32, i32) {
    %c0_i32 = arith.constant 0 : i32
    %c0_i32_0 = arith.constant 0 : i32
    %c0_i32_1 = arith.constant 0 : i32
    %c0_i32_2 = arith.constant 0 : i32
    return %c0_i32, %c0_i32_0, %c0_i32_1 : i32, i32, i32
  }
  func.func @transform_2(%arg0: i32) -> (i32, i32, i32) {
    %c0_i32 = arith.constant 0 : i32
    %c0_i32_0 = arith.constant 0 : i32
    %c0_i32_1 = arith.constant 0 : i32
    %c0_i32_2 = arith.constant 0 : i32
    return %c0_i32, %c0_i32_0, %c0_i32_1 : i32, i32, i32
  }
  func.func @transform_3(%arg0: i32) -> (i32, i32, i32) {
    %c0_i32 = arith.constant 0 : i32
    %c0_i32_0 = arith.constant 0 : i32
    %c0_i32_1 = arith.constant 0 : i32
    return %arg0, %c0_i32, %c0_i32_0 : i32, i32, i32
  }
  func.func @transform_4(%arg0: i32) -> (i32, i32, i32) {
    %c0_i32 = arith.constant 0 : i32
    %c0_i32_0 = arith.constant 0 : i32
    %c0_i32_1 = arith.constant 0 : i32
    return %arg0, %c0_i32, %c0_i32_0 : i32, i32, i32
  }
}

module attributes {stable_mosaic.version = 11 : i64} {
  func.func @_pass3_kernel(%arg0: i32, %arg1: memref<2x16x128xf32, #tpu.memory_space<vmem>>, %arg2: memref<2x16x128xf32, #tpu.memory_space<vmem>>, %arg3: memref<1x2x128xf32, #tpu.memory_space<vmem>>, %arg4: memref<1x2x128xf32, #tpu.memory_space<vmem>>, %arg5: memref<2x16x128xf32, #tpu.memory_space<vmem>>) attributes {dimension_semantics = [#tpu.dimension_semantics<parallel>], iteration_bounds = array<i64: 1>, scalar_prefetch = 0 : i64, scratch_operands = 0 : i64, tpu.core_type = #tpu.core_type<tc>, window_params = [{transform_indices = @transform_0, window_bounds = array<i64: 2, 16, 128>}, {transform_indices = @transform_1, window_bounds = array<i64: 2, 16, 128>}, {pipeline_mode = #tpu.pipeline_mode<synchronous>, transform_indices = @transform_2, window_bounds = array<i64: 1, 2, 128>}, {pipeline_mode = #tpu.pipeline_mode<synchronous>, transform_indices = @transform_3, window_bounds = array<i64: 1, 2, 128>}, {transform_indices = @transform_4, window_bounds = array<i64: 2, 16, 128>}]} {
    %c0 = arith.constant 0 : index
    %c0_0 = arith.constant 0 : index
    %c0_1 = arith.constant 0 : index
    %0 = vector.load %arg3[%c0, %c0_0, %c0_1] : memref<1x2x128xf32, #tpu.memory_space<vmem>>, vector<1x2x128xf32>
    %c0_2 = arith.constant 0 : index
    %c0_3 = arith.constant 0 : index
    %c0_4 = arith.constant 0 : index
    %1 = vector.load %arg1[%c0_2, %c0_3, %c0_4] : memref<2x16x128xf32, #tpu.memory_space<vmem>>, vector<2x16x128xf32>
    %2 = vector.extract_strided_slice %0 {offsets = [0, 0, 0], sizes = [1, 1, 128], strides = [1, 1, 1]} : vector<1x2x128xf32> to vector<1x1x128xf32>
    %3 = vector.broadcast %2 : vector<1x1x128xf32> to vector<2x16x128xf32>
    %4 = arith.mulf %1, %3 : vector<2x16x128xf32>
    %5 = vector.extract_strided_slice %0 {offsets = [0, 1, 0], sizes = [1, 1, 128], strides = [1, 1, 1]} : vector<1x2x128xf32> to vector<1x1x128xf32>
    %6 = vector.broadcast %5 : vector<1x1x128xf32> to vector<2x16x128xf32>
    %7 = arith.addf %4, %6 : vector<2x16x128xf32>
    %c0_5 = arith.constant 0 : index
    %c0_6 = arith.constant 0 : index
    %c0_7 = arith.constant 0 : index
    %8 = vector.load %arg2[%c0_5, %c0_6, %c0_7] : memref<2x16x128xf32, #tpu.memory_space<vmem>>, vector<2x16x128xf32>
    %c0_8 = arith.constant 0 : index
    %c0_9 = arith.constant 0 : index
    %c0_10 = arith.constant 0 : index
    %9 = vector.load %arg4[%c0_8, %c0_9, %c0_10] : memref<1x2x128xf32, #tpu.memory_space<vmem>>, vector<1x2x128xf32>
    %10 = vector.extract_strided_slice %9 {offsets = [0, 0, 0], sizes = [1, 1, 128], strides = [1, 1, 1]} : vector<1x2x128xf32> to vector<1x1x128xf32>
    %11 = vector.broadcast %10 : vector<1x1x128xf32> to vector<2x16x128xf32>
    %12 = arith.mulf %8, %11 : vector<2x16x128xf32>
    %13 = vector.extract_strided_slice %9 {offsets = [0, 1, 0], sizes = [1, 1, 128], strides = [1, 1, 1]} : vector<1x2x128xf32> to vector<1x1x128xf32>
    %14 = vector.broadcast %13 : vector<1x1x128xf32> to vector<2x16x128xf32>
    %15 = arith.addf %12, %14 : vector<2x16x128xf32>
    %16 = arith.addf %7, %15 : vector<2x16x128xf32>
    %cst = arith.constant 0.000000e+00 : f32
    %17 = vector.broadcast %cst : f32 to vector<2x16x128xf32>
    %18 = arith.maximumf %16, %17 : vector<2x16x128xf32>
    %c0_11 = arith.constant 0 : index
    %c0_12 = arith.constant 0 : index
    %c0_13 = arith.constant 0 : index
    %19 = vector.load %arg5[%c0_11, %c0_12, %c0_13] : memref<2x16x128xf32, #tpu.memory_space<vmem>>, vector<2x16x128xf32>
    tpu.vector_store %arg5[%c0_11, %c0_12, %c0_13], %18 {strides = array<i32>} : memref<2x16x128xf32, #tpu.memory_space<vmem>>, vector<2x16x128xf32>,
    return
  }
  func.func @transform_0(%arg0: i32) -> (i32, i32, i32) {
    %c0_i32 = arith.constant 0 : i32
    %c0_i32_0 = arith.constant 0 : i32
    %c0_i32_1 = arith.constant 0 : i32
    return %arg0, %c0_i32, %c0_i32_0 : i32, i32, i32
  }
  func.func @transform_1(%arg0: i32) -> (i32, i32, i32) {
    %c0_i32 = arith.constant 0 : i32
    %c0_i32_0 = arith.constant 0 : i32
    %c0_i32_1 = arith.constant 0 : i32
    return %arg0, %c0_i32, %c0_i32_0 : i32, i32, i32
  }
  func.func @transform_2(%arg0: i32) -> (i32, i32, i32) {
    %c0_i32 = arith.constant 0 : i32
    %c0_i32_0 = arith.constant 0 : i32
    %c0_i32_1 = arith.constant 0 : i32
    %c0_i32_2 = arith.constant 0 : i32
    return %c0_i32, %c0_i32_0, %c0_i32_1 : i32, i32, i32
  }
  func.func @transform_3(%arg0: i32) -> (i32, i32, i32) {
    %c0_i32 = arith.constant 0 : i32
    %c0_i32_0 = arith.constant 0 : i32
    %c0_i32_1 = arith.constant 0 : i32
    %c0_i32_2 = arith.constant 0 : i32
    return %c0_i32, %c0_i32_0, %c0_i32_1 : i32, i32, i32
  }
  func.func @transform_4(%arg0: i32) -> (i32, i32, i32) {
    %c0_i32 = arith.constant 0 : i32
    %c0_i32_0 = arith.constant 0 : i32
    %c0_i32_1 = arith.constant 0 : i32
    return %arg0, %c0_i32, %c0_i32_0 : i32, i32, i32
  }
}

</mosaic_0001>

<llo_original>
// kernel: tpu_custom_call.1
$region0: #{tpu_custom_call.1}
  #allocation0 [shape = 'u32[]', space=smem, size = 0x4, offset = 0x4, fixed_abs, tag = 'smem constant byte address 0x4 - core index']
  #allocation1 [shape = 'u32[144,128]{1,0:T(1,128)}', space=vmem, size = 0x12000, scoped, tag = 'internal scratch']
  %s0 = inlined_call_operand.hbm [shape: f32[8,128], index: 0, kind: input, shape index: {}]
  %s1 = inlined_call_operand.hbm [shape: f32[8,128], index: 1, kind: output, shape index: {}]
  %s2 = sld [smem:[#allocation0]]
  $region18: #{tpu_custom_call.1} parent=0
    _
  %s4 = ssub.s32 1, %s2
  %s5 = scalar_select 0, %s4, %s2
  $region1: #{tpu_custom_call.1} parent=0
    #allocation2 [shape = 'u8[4096]{0}', space=vmem, size = 0x1000, scoped, tag = 'input window, operand 0, single buffered']
    #allocation3 [shape = 's32[1]{0}', space=sflag, size = 0x4, scoped, tag = 'scoped memory for tpu_custom_call.1']
    #allocation4 [shape = 's32[1]{0}', space=sflag, size = 0x4, scoped, tag = 'scoped memory for tpu_custom_call.1']
    #allocation5 [shape = 'u8[4096]{0}', space=vmem, size = 0x1000, scoped, tag = 'output window, operand 0, single buffered']
    %6 = vsyncpa [#allocation3], 0
    %7 = vsyncpa [#allocation4], 0
    // Predicated region
    $region2: #{tpu_custom_call.1} parent=1 // pred_check
      _
    $region3: #{tpu_custom_call.1} parent=1 // pred_check_branch
      %9 = sbr.rel (0) target = $region5
    $region4: #{tpu_custom_call.1} parent=1 // pred_region
      %s11 = ssub.s32 128, 128
      %12 = vsyncadd [#allocation3], %s11
      %s14 = sshll.u32 [#allocation2], 4
      %s15 = int_to_ptr.vmem [resolvable:$true] %s14
      %17 = dma.hbm_to_vmem [thread:$0]  %s0, 128, %s15, [#allocation3]
    $region5: #{tpu_custom_call.1} parent=1 // pred_fallthru
      _
    // Predicated region
    $region6: #{tpu_custom_call.1} parent=1 // pred_check
      _
    $region7: #{tpu_custom_call.1} parent=1 // pred_check_branch
      %19 = sbr.rel (0) target = $region9
    $region8: #{tpu_custom_call.1} parent=1 // pred_region
      %20 = dma.done [#allocation3], 128
    $region9: #{tpu_custom_call.1} parent=1 // pred_fallthru
      _
    %v21 = vld [vmem:[#allocation2] sm:$0xff]
    %v22 = vrot.slane %v21, 7
    %23 = vst [vmem:[#allocation5] sm:$0xff] %v22
    // Predicated region
    $region10: #{tpu_custom_call.1} parent=1 // pred_check
      _
    $region11: #{tpu_custom_call.1} parent=1 // pred_check_branch
      %25 = sbr.rel (0) target = $region13
    $region12: #{tpu_custom_call.1} parent=1 // pred_region
      %s27 = ssub.s32 128, 128
      %28 = vsyncadd [#allocation4], %s27
      %s30 = sshll.u32 [#allocation5], 4
      %s31 = int_to_ptr.vmem [resolvable:$true] %s30
      %33 = dma.vmem_to_hbm [thread:$0]  %s31, 128, %s1, [#allocation4]
    $region13: #{tpu_custom_call.1} parent=1 // pred_fallthru
      _
    // Predicated region
    $region14: #{tpu_custom_call.1} parent=1 // pred_check
      _
    $region15: #{tpu_custom_call.1} parent=1 // pred_check_branch
      %35 = sbr.rel (0) target = $region17
    $region16: #{tpu_custom_call.1} parent=1 // pred_region
      %36 = dma.done [#allocation4], 128
    $region17: #{tpu_custom_call.1} parent=1 // pred_fallthru
      _
    %37 = vsyncpa [#allocation3], 1
    %38 = vsyncpa [#allocation4], 1

// kernel: _residual_block_impl.4
$region0: #{_residual_block_impl.4}
  #allocation0 [shape = 'u32[]', space=smem, size = 0x4, offset = 0x4, fixed_abs, tag = 'smem constant byte address 0x4 - core index']
  #allocation1 [shape = 'u32[144,128]{1,0:T(1,128)}', space=vmem, size = 0x12000, scoped, tag = 'internal scratch']
  %s0 = inlined_call_operand.hbm [shape: f32[2,16,128], index: 0, kind: input, shape index: {}, may-alias: {0,3}]
  %s1 = inlined_call_operand.hbm [shape: f32[1,2,128], index: 1, kind: input, shape index: {}]
  %s2 = inlined_call_operand.hbm [shape: f32[3,128,128], index: 2, kind: input, shape index: {}]
  %s3 = inlined_call_operand.hbm [shape: f32[2,16,128], index: 3, kind: output, shape index: {0}, may-alias: {0,3}]
  %s4 = inlined_call_operand.hbm [shape: f32[1,2,128], index: 4, kind: output, shape index: {1}]
  %5 = xla_tuple %s3, %s4
  %s6 = sld [smem:[#allocation0]]
  $region42: #{_residual_block_impl.4} parent=0
    _
  %s8 = ssub.s32 1, %s6
  %s9 = scalar_select 0, %s8, %s6
  $region1: #{_residual_block_impl.4} parent=0
    #allocation2 [shape = 'u8[16384]{0}', space=vmem, size = 0x4000, scoped, tag = 'input window, operand 0, single buffered']
    #allocation3 [shape = 's32[1]{0}', space=sflag, size = 0x4, scoped, tag = 'scoped memory for _residual_block_impl.4']
    #allocation4 [shape = 's32[1]{0}', space=sflag, size = 0x4, scoped, tag = 'scoped memory for _residual_block_impl.4']
    #allocation5 [shape = 'u8[1024]{0}', space=vmem, size = 0x400, scoped, tag = 'input window, operand 1, single buffered']
    #allocation6 [shape = 's32[1]{0}', space=sflag, size = 0x4, scoped, tag = 'scoped memory for _residual_block_impl.4']
    #allocation7 [shape = 'u8[196608]{0}', space=vmem, size = 0x30000, scoped, tag = 'input window, operand 2, single buffered']
    #allocation8 [shape = 'u8[16384]{0}', space=vmem, size = 0x4000, scoped, tag = 'output window, operand 0, single buffered']
    #allocation9 [shape = 'u8[1024]{0}', space=vmem, size = 0x400, scoped, tag = 'output window, operand 1, single buffered']
    #allocation10 [shape = 's32[1]{0}', space=sflag, size = 0x4, scoped, tag = 'scoped memory for _residual_block_impl.4']
    %10 = vsyncpa [#allocation3], 0
    %11 = vsyncpa [#allocation6], 0
    %12 = vsyncpa [#allocation4], 0
    %13 = vsyncpa [#allocation10], 0
    // Predicated region
    $region2: #{_residual_block_impl.4} parent=1 // pred_check
      _
    $region3: #{_residual_block_impl.4} parent=1 // pred_check_branch
      %15 = sbr.rel (0) target = $region5
    $region4: #{_residual_block_impl.4} parent=1 // pred_region
      %s17 = ssub.s32 512, 512
      %18 = vsyncadd [#allocation3], %s17
      %s19 = sshll.u32 [#allocation2], 4
      %s20 = int_to_ptr.vmem [resolvable:$true] %s19
      %25 = dma.hbm_to_vmem [thread:$0]  %s0, 512, %s20, [#allocation3], 128, 128, 8
    $region5: #{_residual_block_impl.4} parent=1 // pred_fallthru
      _
    // Predicated region
    $region6: #{_residual_block_impl.4} parent=1 // pred_check
      _
    $region7: #{_residual_block_impl.4} parent=1 // pred_check_branch
      %27 = sbr.rel (0) target = $region9
    $region8: #{_residual_block_impl.4} parent=1 // pred_region
      %s29 = ssub.s32 32, 32
      %30 = vsyncadd [#allocation6], %s29
      %s32 = sshll.u32 [#allocation5], 4
      %s33 = int_to_ptr.vmem [resolvable:$true] %s32
      %35 = dma.hbm_to_vmem [thread:$0]  %s1, 32, %s33, [#allocation6]
    $region9: #{_residual_block_impl.4} parent=1 // pred_fallthru
      _
    // Predicated region
    $region10: #{_residual_block_impl.4} parent=1 // pred_check
      _
    $region11: #{_residual_block_impl.4} parent=1 // pred_check_branch
      %37 = sbr.rel (0) target = $region13
    $region12: #{_residual_block_impl.4} parent=1 // pred_region
      %s39 = ssub.s32 6144, 6144
      %40 = vsyncadd [#allocation6], %s39
      %s41 = sshll.u32 [#allocation7], 4
      %s42 = int_to_ptr.vmem [resolvable:$true] %s41
      %47 = dma.hbm_to_vmem [thread:$0]  %s2, 6144, %s42, [#allocation6], 128, 128, 8
    $region13: #{_residual_block_impl.4} parent=1 // pred_fallthru
      _
    // Predicated region
    $region14: #{_residual_block_impl.4} parent=1 // pred_check
      _
    $region15: #{_residual_block_impl.4} parent=1 // pred_check_branch
      %49 = sbr.rel (0) target = $region17
    $region16: #{_residual_block_impl.4} parent=1 // pred_region
      %50 = dma.done [#allocation3], 512
    $region17: #{_residual_block_impl.4} parent=1 // pred_fallthru
      _
    // Predicated region
    $region18: #{_residual_block_impl.4} parent=1 // pred_check
      _
    $region19: #{_residual_block_impl.4} parent=1 // pred_check_branch
      %52 = sbr.rel (0) target = $region21
    $region20: #{_residual_block_impl.4} parent=1 // pred_region
      %53 = dma.done [#allocation6], 32
    $region21: #{_residual_block_impl.4} parent=1 // pred_fallthru
      _
    // Predicated region
    $region22: #{_residual_block_impl.4} parent=1 // pred_check
      _
    $region23: #{_residual_block_impl.4} parent=1 // pred_check_branch
      %55 = sbr.rel (0) target = $region25
    $region24: #{_residual_block_impl.4} parent=1 // pred_region
      %56 = dma.done [#allocation6], 6144
    $region25: #{_residual_block_impl.4} parent=1 // pred_fallthru
      _
    %v57 = vld [vmem:[#allocation5] sm:$0x3]
    %v58 = vld [vmem:[#allocation2] sm:$0xff]
    %v59 = vld [vmem:[#allocation2 + $0x8] sm:$0xff]
    %v60 = vld [vmem:[#allocation2 + $0x10] sm:$0xff]
    %v61 = vld [vmem:[#allocation2 + $0x18] sm:$0xff]
    %v62 = vlaneseq
    %v63 = vshrl.u32 %v62, 7
    %v64 = vsub.s32 0, %v63
    %v65 = vrot.slane %v57, %v64
    %v66 = vmul.f32 %v58, %v65
    %v67 = vmul.f32 %v59, %v65
    %v68 = vmul.f32 %v60, %v65
    %v69 = vmul.f32 %v61, %v65
    %v70 = vlaneseq
    %v71 = vshrl.u32 %v70, 7
    %v72 = vsub.s32 1, %v71
    %v73 = vrot.slane %v57, %v72
    %v74 = vadd.f32 %v66, %v73
    %v75 = vadd.f32 %v67, %v73
    %v76 = vadd.f32 %v68, %v73
    %v77 = vadd.f32 %v69, %v73
    %v78 = vmax.f32 %v74, 0.0
    %v79 = vmax.f32 %v75, 0.0
    %v80 = vmax.f32 %v76, 0.0
    %v81 = vmax.f32 %v77, 0.0
    %s82 = scalar_lea.vmem [#allocation7], 128
    %v83 = vld [vmem:[%s82] sm:$0xff]
    %v84 = vld [vmem:[%s82 + $0x8] sm:$0xff]
    %v85 = vld [vmem:[%s82 + $0x10] sm:$0xff]
    %v86 = vld [vmem:[%s82 + $0x18] sm:$0xff]
    %v87 = vld [vmem:[%s82 + $0x20] sm:$0xff]
    %v88 = vld [vmem:[%s82 + $0x28] sm:$0xff]
    %v89 = vld [vmem:[%s82 + $0x30] sm:$0xff]
    %v90 = vld [vmem:[%s82 + $0x38] sm:$0xff]
    %v91 = vld [vmem:[%s82 + $0x40] sm:$0xff]
    %v92 = vld [vmem:[%s82 + $0x48] sm:$0xff]
    %v93 = vld [vmem:[%s82 + $0x50] sm:$0xff]
    %v94 = vld [vmem:[%s82 + $0x58] sm:$0xff]
    %v95 = vld [vmem:[%s82 + $0x60] sm:$0xff]
    %v96 = vld [vmem:[%s82 + $0x68] sm:$0xff]
    %v97 = vld [vmem:[%s82 + $0x70] sm:$0xff]
    %v98 = vld [vmem:[%s82 + $0x78] sm:$0xff]
    %v99 = vld [vmem:[#allocation7] sm:$0xff]
    %v100 = vld [vmem:[#allocation7 + $0x8] sm:$0xff]
    %v101 = vld [vmem:[#allocation7 + $0x10] sm:$0xff]
    %v102 = vld [vmem:[#allocation7 + $0x18] sm:$0xff]
    %v103 = vld [vmem:[#allocation7 + $0x20] sm:$0xff]
    %v104 = vld [vmem:[#allocation7 + $0x28] sm:$0xff]
    %v105 = vld [vmem:[#allocation7 + $0x30] sm:$0xff]
    %v106 = vld [vmem:[#allocation7 + $0x38] sm:$0xff]
    %v107 = vld [vmem:[#allocation7 + $0x40] sm:$0xff]
    %v108 = vld [vmem:[#allocation7 + $0x48] sm:$0xff]
    %v109 = vld [vmem:[#allocation7 + $0x50] sm:$0xff]
    %v110 = vld [vmem:[#allocation7 + $0x58] sm:$0xff]
    %v111 = vld [vmem:[#allocation7 + $0x60] sm:$0xff]
    %v112 = vld [vmem:[#allocation7 + $0x68] sm:$0xff]
    %v113 = vld [vmem:[#allocation7 + $0x70] sm:$0xff]
    %v114 = vld [vmem:[#allocation7 + $0x78] sm:$0xff]
    %115 = vmatprep.subr.mxu0 0.0
    %116 = vmatpush1.msra.mxu0 %v99
    %117 = vmatprep.subr.mxu0 0.0
    %118 = vmatpush1.msra.mxu0 %v100
    %119 = vmatprep.subr.mxu0 0.0
    %120 = vmatpush1.msra.mxu0 %v101
    %121 = vmatprep.subr.mxu0 0.0
    %122 = vmatpush1.msra.mxu0 %v102
    %123 = vmatprep.subr.mxu0 0.0
    %124 = vmatpush1.msra.mxu0 %v103
    %125 = vmatprep.subr.mxu0 0.0
    %126 = vmatpush1.msra.mxu0 %v104
    %127 = vmatprep.subr.mxu0 0.0
    %128 = vmatpush1.msra.mxu0 %v105
    %129 = vmatprep.subr.mxu0 0.0
    %130 = vmatpush1.msra.mxu0 %v106
    %131 = vmatprep.subr.mxu0 0.0
    %132 = vmatpush1.msra.mxu0 %v107
    %133 = vmatprep.subr.mxu0 0.0
    %134 = vmatpush1.msra.mxu0 %v108
    %135 = vmatprep.subr.mxu0 0.0
    %136 = vmatpush1.msra.mxu0 %v109
    %137 = vmatprep.subr.mxu0 0.0
    %138 = vmatpush1.msra.mxu0 %v110
    %139 = vmatprep.subr.mxu0 0.0
    %140 = vmatpush1.msra.mxu0 %v111
    %141 = vmatprep.subr.mxu0 0.0
    %142 = vmatpush1.msra.mxu0 %v112
    %143 = vmatprep.subr.mxu0 0.0
    %144 = vmatpush1.msra.mxu0 %v113
    %145 = vmatprep.subr.mxu0 0.0
    %146 = vmatpush1.msra.mxu0 %v114
    %147 = vmatprep.subr.mxu0 0.0
    %148 = vmatpush1.msra.mxu0 0.0
    %149 = vmatprep.subr.mxu0 0.0
    %150 = vmatpush1.msra.mxu0 0.0
    %151 = vmatprep.subr.mxu0 0.0
    %152 = vmatpush1.msra.mxu0 0.0
    %153 = vmatprep.subr.mxu0 0.0
    %154 = vmatpush1.msra.mxu0 0.0
    %155 = vmatprep.subr.mxu0 0.0
    %156 = vmatpush1.msra.mxu0 0.0
    %157 = vmatprep.subr.mxu0 0.0
    %158 = vmatpush1.msra.mxu0 0.0
    %159 = vmatprep.subr.mxu0 0.0
    %160 = vmatpush1.msra.mxu0 0.0
    %161 = vmatprep.subr.mxu0 0.0
    %162 = vmatpush1.msra.mxu0 0.0
    %163 = vmatprep.subr.mxu0 0.0
    %164 = vmatpush1.msra.mxu0 0.0
    %165 = vmatprep.subr.mxu0 0.0
    %166 = vmatpush1.msra.mxu0 0.0
    %167 = vmatprep.subr.mxu0 0.0
    %168 = vmatpush1.msra.mxu0 0.0
    %169 = vmatprep.subr.mxu0 0.0
    %170 = vmatpush1.msra.mxu0 0.0
    %171 = vmatprep.subr.mxu0 0.0
    %172 = vmatpush1.msra.mxu0 0.0
    %173 = vmatprep.subr.mxu0 0.0
    %174 = vmatpush1.msra.mxu0 0.0
    %175 = vmatprep.subr.mxu0 0.0
    %176 = vmatpush1.msra.mxu0 0.0
    %177 = vmatprep.subr.mxu0 0.0
    %178 = vmatpush1.msra.mxu0 0.0
    %179 = vmatprep.mubr.f32.mxu0 0.0
    %180 = vmatmul.mubr.f32.gmra.mrb[0].mxu0 %v78
    %v181 = vpop.f32.mrb[0].mxu0
    %v182 = vadd.f32 0.0, %v181
    %v183 = vpop.f32.mrb[0].mxu0
    %184 = vmatprep.mubr.f32.mxu0 0.0
    %185 = vmatmul.mubr.f32.gmra.mrb[0].mxu0 %v79
    %v186 = vpop.f32.mrb[0].mxu0
    %v187 = vadd.f32 0.0, %v186
    %v188 = vpop.f32.mrb[0].mxu0
    %189 = vmatprep.mubr.f32.mxu0 0.0
    %190 = vmatmul.mubr.f32.gmra.mrb[0].mxu0 %v80
    %v191 = vpop.f32.mrb[0].mxu0
    %v192 = vadd.f32 0.0, %v191
    %v193 = vpop.f32.mrb[0].mxu0
    %194 = vmatprep.mubr.f32.mxu0 0.0
    %195 = vmatmul.mubr.f32.gmra.mrb[0].mxu0 %v81
    %v196 = vpop.f32.mrb[0].mxu0
    %v197 = vadd.f32 0.0, %v196
    %v198 = vpop.f32.mrb[0].mxu0
    %199 = vdwg.mxu0
    %v200 = vlaneseq
    %v201 = vshrl.u32 %v200, 7
    %v202 = vadd.s32 %v201, 8
    %v203 = vadd.s32 %v201, 16
    %v204 = vadd.s32 %v201, 24
    %vm205 = vcmp.lt.s32.totalorder %v201, 0
    %v206 = vsub.s32 0, %v201
    %v207 = vsel %vm205, %v206, %v201
    %v208 = vshrl.u32 %v207, 4
    %v209 = vand.u32 %v207, 15
    %v210 = vsub.s32 0, %v209
    %v211 = vsel %vm205, %v210, %v209
    %vm212 = vcmp.lt.s32.totalorder %v202, 0
    %v213 = vsub.s32 0, %v202
    %v214 = vsel %vm212, %v213, %v202
    %v215 = vshrl.u32 %v214, 4
    %v216 = vand.u32 %v214, 15
    %v217 = vsub.s32 0, %v216
    %v218 = vsel %vm212, %v217, %v216
    %vm219 = vcmp.lt.s32.totalorder %v203, 0
    %v220 = vsub.s32 0, %v203
    %v221 = vsel %vm219, %v220, %v203
    %v222 = vshrl.u32 %v221, 4
    %v223 = vand.u32 %v221, 15
    %v224 = vsub.s32 0, %v223
    %v225 = vsel %vm219, %v224, %v223
    %vm226 = vcmp.lt.s32.totalorder %v204, 0
    %v227 = vsub.s32 0, %v204
    %v228 = vsel %vm226, %v227, %v204
    %v229 = vshrl.u32 %v228, 4
    %v230 = vand.u32 %v228, 15
    %v231 = vsub.s32 0, %v230
    %v232 = vsel %vm226, %v231, %v230
    %vm233 = vcmp.ne.s32.totalorder %v211, 0
    %vm234 = vcmp.ne.s32.totalorder %v218, 0
    %vm235 = vcmp.ne.s32.totalorder %v225, 0
    %vm236 = vcmp.ne.s32.totalorder %v232, 0
    %vm237 = vcmp.lt.s32.totalorder %v211, 0
    %vm238 = vcmp.lt.s32.totalorder %v218, 0
    %vm239 = vcmp.lt.s32.totalorder %v225, 0
    %vm240 = vcmp.lt.s32.totalorder %v232, 0
    %vm241 = vmand %vm237, %vm233
    %vm242 = vmand %vm238, %vm234
    %vm243 = vmand %vm239, %vm235
    %vm244 = vmand %vm240, %vm236
    %v245 = vadd.s32 %v211, 16
    %v246 = vadd.s32 %v218, 16
    %v247 = vadd.s32 %v225, 16
    %v248 = vadd.s32 %v232, 16
    %v249 = vsel %vm241, %v245, %v211
    %v250 = vsel %vm242, %v246, %v218
    %v251 = vsel %vm243, %v247, %v225
    %v252 = vsel %vm244, %v248, %v232
    %vm257 = vcmask 1040384
    %v258 = vrot.slane %v182, 7
    %v259 = vrot.slane %v187, 7
    %v260 = vsel %vm257, %v258, %v259
    %v261 = vrot.slane %v192, 7
    %v262 = vsel %vm257, %v259, %v261
    %v263 = vrot.slane %v197, 7
    %v264 = vsel %vm257, %v261, %v263
    %v269 = vsel %vm257, 0.0, %v258
    %vm270 = vcmp.ne.s32.totalorder %v249, 0
    %vm271 = vcmp.ne.s32.totalorder %v250, 0
    %vm272 = vcmp.ne.s32.totalorder %v251, 0
    %vm273 = vcmp.ne.s32.totalorder %v252, 0
    %v274 = vsel %vm270, 1, 0
    %v275 = vsel %vm271, 1, 0
    %v276 = vsel %vm272, 1, 0
    %v277 = vsel %vm273, 1, 0
    %vm278 = vcmp.eq.s32.totalorder %v274, 1
    %vm279 = vcmp.eq.s32.totalorder %v275, 1
    %vm280 = vcmp.eq.s32.totalorder %v276, 1
    %vm281 = vcmp.eq.s32.totalorder %v277, 1
    %v282 = vsel %vm278, %v269, 0.0
    %v283 = vsel %vm279, %v260, 0.0
    %v284 = vsel %vm280, %v262, 0.0
    %v285 = vsel %vm281, %v264, 0.0
    %286 = vmatprep.subr.mxu0 0.0
    %287 = vmatpush1.msra.mxu0 %v83
    %288 = vmatprep.subr.mxu0 0.0
    %289 = vmatpush1.msra.mxu0 %v84
    %290 = vmatprep.subr.mxu0 0.0
    %291 = vmatpush1.msra.mxu0 %v85
    %292 = vmatprep.subr.mxu0 0.0
    %293 = vmatpush1.msra.mxu0 %v86
    %294 = vmatprep.subr.mxu0 0.0
    %295 = vmatpush1.msra.mxu0 %v87
    %296 = vmatprep.subr.mxu0 0.0
    %297 = vmatpush1.msra.mxu0 %v88
    %298 = vmatprep.subr.mxu0 0.0
    %299 = vmatpush1.msra.mxu0 %v89
    %300 = vmatprep.subr.mxu0 0.0
    %301 = vmatpush1.msra.mxu0 %v90
    %302 = vmatprep.subr.mxu0 0.0
    %303 = vmatpush1.msra.mxu0 %v91
    %304 = vmatprep.subr.mxu0 0.0
    %305 = vmatpush1.msra.mxu0 %v92
    %306 = vmatprep.subr.mxu0 0.0
    %307 = vmatpush1.msra.mxu0 %v93
    %308 = vmatprep.subr.mxu0 0.0
    %309 = vmatpush1.msra.mxu0 %v94
    %310 = vmatprep.subr.mxu0 0.0
    %311 = vmatpush1.msra.mxu0 %v95
    %312 = vmatprep.subr.mxu0 0.0
    %313 = vmatpush1.msra.mxu0 %v96
    %314 = vmatprep.subr.mxu0 0.0
    %315 = vmatpush1.msra.mxu0 %v97
    %316 = vmatprep.subr.mxu0 0.0
    %317 = vmatpush1.msra.mxu0 %v98
    %318 = vmatprep.subr.mxu0 0.0
    %319 = vmatpush1.msra.mxu0 0.0
    %320 = vmatprep.subr.mxu0 0.0
    %321 = vmatpush1.msra.mxu0 0.0
    %322 = vmatprep.subr.mxu0 0.0
    %323 = vmatpush1.msra.mxu0 0.0
    %324 = vmatprep.subr.mxu0 0.0
    %325 = vmatpush1.msra.mxu0 0.0
    %326 = vmatprep.subr.mxu0 0.0
    %327 = vmatpush1.msra.mxu0 0.0
    %328 = vmatprep.subr.mxu0 0.0
    %329 = vmatpush1.msra.mxu0 0.0
    %330 = vmatprep.subr.mxu0 0.0
    %331 = vmatpush1.msra.mxu0 0.0
    %332 = vmatprep.subr.mxu0 0.0
    %333 = vmatpush1.msra.mxu0 0.0
    %334 = vmatprep.subr.mxu0 0.0
    %335 = vmatpush1.msra.mxu0 0.0
    %336 = vmatprep.subr.mxu0 0.0
    %337 = vmatpush1.msra.mxu0 0.0
    %338 = vmatprep.subr.mxu0 0.0
    %339 = vmatpush1.msra.mxu0 0.0
    %340 = vmatprep.subr.mxu0 0.0
    %341 = vmatpush1.msra.mxu0 0.0
    %342 = vmatprep.subr.mxu0 0.0
    %343 = vmatpush1.msra.mxu0 0.0
    %344 = vmatprep.subr.mxu0 0.0
    %345 = vmatpush1.msra.mxu0 0.0
    %346 = vmatprep.subr.mxu0 0.0
    %347 = vmatpush1.msra.mxu0 0.0
    %348 = vmatprep.subr.mxu0 0.0
    %349 = vmatpush1.msra.mxu0 0.0
    %350 = vmatprep.mubr.f32.mxu0 0.0
    %351 = vmatmul.mubr.f32.gmra.mrb[0].mxu0 %v78
    %v352 = vpop.f32.mrb[0].mxu0
    %v353 = vadd.f32 %v282, %v352
    %v354 = vpop.f32.mrb[0].mxu0
    %355 = vmatprep.mubr.f32.mxu0 0.0
    %356 = vmatmul.mubr.f32.gmra.mrb[0].mxu0 %v79
    %v357 = vpop.f32.mrb[0].mxu0
    %v358 = vadd.f32 %v283, %v357
    %v359 = vpop.f32.mrb[0].mxu0
    %360 = vmatprep.mubr.f32.mxu0 0.0
    %361 = vmatmul.mubr.f32.gmra.mrb[0].mxu0 %v80
    %v362 = vpop.f32.mrb[0].mxu0
    %v363 = vadd.f32 %v284, %v362
    %v364 = vpop.f32.mrb[0].mxu0
    %365 = vmatprep.mubr.f32.mxu0 0.0
    %366 = vmatmul.mubr.f32.gmra.mrb[0].mxu0 %v81
    %v367 = vpop.f32.mrb[0].mxu0
    %v368 = vadd.f32 %v285, %v367
    %v369 = vpop.f32.mrb[0].mxu0
    %370 = vdwg.mxu0
    %s371 = scalar_lea.vmem [#allocation7], 256
    %v372 = vld [vmem:[%s371] sm:$0xff]
    %v373 = vld [vmem:[%s371 + $0x8] sm:$0xff]
    %v374 = vld [vmem:[%s371 + $0x10] sm:$0xff]
    %v375 = vld [vmem:[%s371 + $0x18] sm:$0xff]
    %v376 = vld [vmem:[%s371 + $0x20] sm:$0xff]
    %v377 = vld [vmem:[%s371 + $0x28] sm:$0xff]
    %v378 = vld [vmem:[%s371 + $0x30] sm:$0xff]
    %v379 = vld [vmem:[%s371 + $0x38] sm:$0xff]
    %v380 = vld [vmem:[%s371 + $0x40] sm:$0xff]
    %v381 = vld [vmem:[%s371 + $0x48] sm:$0xff]
    %v382 = vld [vmem:[%s371 + $0x50] sm:$0xff]
    %v383 = vld [vmem:[%s371 + $0x58] sm:$0xff]
    %v384 = vld [vmem:[%s371 + $0x60] sm:$0xff]
    %v385 = vld [vmem:[%s371 + $0x68] sm:$0xff]
    %v386 = vld [vmem:[%s371 + $0x70] sm:$0xff]
    %v387 = vld [vmem:[%s371 + $0x78] sm:$0xff]
    %388 = vmatprep.subr.mxu0 0.0
    %389 = vmatpush1.msra.mxu0 %v372
    %390 = vmatprep.subr.mxu0 0.0
    %391 = vmatpush1.msra.mxu0 %v373
    %392 = vmatprep.subr.mxu0 0.0
    %393 = vmatpush1.msra.mxu0 %v374
    %394 = vmatprep.subr.mxu0 0.0
    %395 = vmatpush1.msra.mxu0 %v375
    %396 = vmatprep.subr.mxu0 0.0
    %397 = vmatpush1.msra.mxu0 %v376
    %398 = vmatprep.subr.mxu0 0.0
    %399 = vmatpush1.msra.mxu0 %v377
    %400 = vmatprep.subr.mxu0 0.0
    %401 = vmatpush1.msra.mxu0 %v378
    %402 = vmatprep.subr.mxu0 0.0
    %403 = vmatpush1.msra.mxu0 %v379
    %404 = vmatprep.subr.mxu0 0.0
    %405 = vmatpush1.msra.mxu0 %v380
    %406 = vmatprep.subr.mxu0 0.0
    %407 = vmatpush1.msra.mxu0 %v381
    %408 = vmatprep.subr.mxu0 0.0
    %409 = vmatpush1.msra.mxu0 %v382
    %410 = vmatprep.subr.mxu0 0.0
    %411 = vmatpush1.msra.mxu0 %v383
    %412 = vmatprep.subr.mxu0 0.0
    %413 = vmatpush1.msra.mxu0 %v384
    %414 = vmatprep.subr.mxu0 0.0
    %415 = vmatpush1.msra.mxu0 %v385
    %416 = vmatprep.subr.mxu0 0.0
    %417 = vmatpush1.msra.mxu0 %v386
    %418 = vmatprep.subr.mxu0 0.0
    %419 = vmatpush1.msra.mxu0 %v387
    %420 = vmatprep.subr.mxu0 0.0
    %421 = vmatpush1.msra.mxu0 0.0
    %422 = vmatprep.subr.mxu0 0.0
    %423 = vmatpush1.msra.mxu0 0.0
    %424 = vmatprep.subr.mxu0 0.0
    %425 = vmatpush1.msra.mxu0 0.0
    %426 = vmatprep.subr.mxu0 0.0
    %427 = vmatpush1.msra.mxu0 0.0
    %428 = vmatprep.subr.mxu0 0.0
    %429 = vmatpush1.msra.mxu0 0.0
    %430 = vmatprep.subr.mxu0 0.0
    %431 = vmatpush1.msra.mxu0 0.0
    %432 = vmatprep.subr.mxu0 0.0
    %433 = vmatpush1.msra.mxu0 0.0
    %434 = vmatprep.subr.mxu0 0.0
    %435 = vmatpush1.msra.mxu0 0.0
    %436 = vmatprep.subr.mxu0 0.0
    %437 = vmatpush1.msra.mxu0 0.0
    %438 = vmatprep.subr.mxu0 0.0
    %439 = vmatpush1.msra.mxu0 0.0
    %440 = vmatprep.subr.mxu0 0.0
    %441 = vmatpush1.msra.mxu0 0.0
    %442 = vmatprep.subr.mxu0 0.0
    %443 = vmatpush1.msra.mxu0 0.0
    %444 = vmatprep.subr.mxu0 0.0
    %445 = vmatpush1.msra.mxu0 0.0
    %446 = vmatprep.subr.mxu0 0.0
    %447 = vmatpush1.msra.mxu0 0.0
    %448 = vmatprep.subr.mxu0 0.0
    %449 = vmatpush1.msra.mxu0 0.0
    %450 = vmatprep.subr.mxu0 0.0
    %451 = vmatpush1.msra.mxu0 0.0
    %452 = vmatprep.mubr.f32.mxu0 0.0
    %453 = vmatmul.mubr.f32.gmra.mrb[0].mxu0 %v78
    %v454 = vpop.f32.mrb[0].mxu0
    %v455 = vadd.f32 0.0, %v454
    %v456 = vpop.f32.mrb[0].mxu0
    %457 = vmatprep.mubr.f32.mxu0 0.0
    %458 = vmatmul.mubr.f32.gmra.mrb[0].mxu0 %v79
    %v459 = vpop.f32.mrb[0].mxu0
    %v460 = vadd.f32 0.0, %v459
    %v461 = vpop.f32.mrb[0].mxu0
    %462 = vmatprep.mubr.f32.mxu0 0.0
    %463 = vmatmul.mubr.f32.gmra.mrb[0].mxu0 %v80
    %v464 = vpop.f32.mrb[0].mxu0
    %v465 = vadd.f32 0.0, %v464
    %v466 = vpop.f32.mrb[0].mxu0
    %467 = vmatprep.mubr.f32.mxu0 0.0
    %468 = vmatmul.mubr.f32.gmra.mrb[0].mxu0 %v81
    %v469 = vpop.f32.mrb[0].mxu0
    %v470 = vadd.f32 0.0, %v469
    %v471 = vpop.f32.mrb[0].mxu0
    %472 = vdwg.mxu0
    %vm477 = vcmask 1046528
    %v478 = vrot.slane %v455, 1
    %v479 = vrot.slane %v460, 1
    %v480 = vsel %vm477, %v478, %v479
    %v481 = vrot.slane %v465, 1
    %v482 = vsel %vm477, %v479, %v481
    %v483 = vrot.slane %v470, 1
    %v484 = vsel %vm477, %v481, %v483
    %v489 = vsel %vm477, %v483, 0.0
    %vm490 = vcmp.ne.s32.totalorder %v249, 15
    %vm491 = vcmp.ne.s32.totalorder %v250, 15
    %vm492 = vcmp.ne.s32.totalorder %v251, 15
    %vm493 = vcmp.ne.s32.totalorder %v252, 15
    %v494 = vsel %vm490, 1, 0
    %v495 = vsel %vm491, 1, 0
    %v496 = vsel %vm492, 1, 0
    %v497 = vsel %vm493, 1, 0
    %vm498 = vcmp.eq.s32.totalorder %v494, 1
    %vm499 = vcmp.eq.s32.totalorder %v495, 1
    %vm500 = vcmp.eq.s32.totalorder %v496, 1
    %vm501 = vcmp.eq.s32.totalorder %v497, 1
    %v502 = vsel %vm498, %v480, 0.0
    %v503 = vsel %vm499, %v482, 0.0
    %v504 = vsel %vm500, %v484, 0.0
    %v505 = vsel %vm501, %v489, 0.0
    %v506 = vadd.f32 %v353, %v502
    %v507 = vadd.f32 %v358, %v503
    %v508 = vadd.f32 %v363, %v504
    %v509 = vadd.f32 %v368, %v505
    %510 = vst [vmem:[#allocation8] sm:$0xff] %v506
    %511 = vst [vmem:[#allocation8 + $0x8] sm:$0xff] %v507
    %512 = vst [vmem:[#allocation8 + $0x10] sm:$0xff] %v508
    %513 = vst [vmem:[#allocation8 + $0x18] sm:$0xff] %v509
    %v514 = vadd.f32 %v506, %v507
    %v515 = vadd.f32 %v514, %v508
    %v516 = vadd.f32 %v515, %v509
    %v517 = vrot.slane %v516, 4
    %v518 = vadd.f32 %v516, %v517
    %v519 = vrot.slane %v518, 2
    %v520 = vadd.f32 %v518, %v519
    %v521 = vrot.slane %v520, 1
    %v522 = vadd.f32 %v520, %v521
    %v523 = vmul.f32 %v522, 0.03125
    %v524 = vsub.f32 %v506, %v523
    %v525 = vsub.f32 %v507, %v523
    %v526 = vsub.f32 %v508, %v523
    %v527 = vsub.f32 %v509, %v523
    %v528 = vmul.f32 %v524, %v524
    %v529 = vmul.f32 %v525, %v525
    %v530 = vmul.f32 %v526, %v526
    %v531 = vmul.f32 %v527, %v527
    %v532 = vadd.f32 %v528, %v529
    %v533 = vadd.f32 %v532, %v530
    %v534 = vadd.f32 %v533, %v531
    %v535 = vrot.slane %v534, 4
    %v536 = vadd.f32 %v534, %v535
    %v537 = vrot.slane %v536, 2
    %v538 = vadd.f32 %v536, %v537
    %v539 = vrot.slane %v538, 1
    %v540 = vadd.f32 %v538, %v539
    %v541 = vsel %vm257, %v522, %v540
    %542 = vst [vmem:[#allocation9] sm:$0x3] %v541
    // Predicated region
    $region26: #{_residual_block_impl.4} parent=1 // pred_check
      _
    $region27: #{_residual_block_impl.4} parent=1 // pred_check_branch
      %544 = sbr.rel (0) target = $region29
    $region28: #{_residual_block_impl.4} parent=1 // pred_region
      %s546 = ssub.s32 512, 512
      %547 = vsyncadd [#allocation4], %s546
      %s548 = sshll.u32 [#allocation8], 4
      %s549 = int_to_ptr.vmem [resolvable:$true] %s548
      %554 = dma.vmem_to_hbm [thread:$0]  %s549, 512, %s3, [#allocation4], 128, 128, 8
    $region29: #{_residual_block_impl.4} parent=1 // pred_fallthru
      _
    // Predicated region
    $region30: #{_residual_block_impl.4} parent=1 // pred_check
      _
    $region31: #{_residual_block_impl.4} parent=1 // pred_check_branch
      %556 = sbr.rel (0) target = $region33
    $region32: #{_residual_block_impl.4} parent=1 // pred_region
      %s558 = ssub.s32 32, 32
      %559 = vsyncadd [#allocation10], %s558
      %s561 = sshll.u32 [#allocation9], 4
      %s562 = int_to_ptr.vmem [resolvable:$true] %s561
      %564 = dma.vmem_to_hbm [thread:$0]  %s562, 32, %s4, [#allocation10]
    $region33: #{_residual_block_impl.4} parent=1 // pred_fallthru
      _
    // Predicated region
    $region34: #{_residual_block_impl.4} parent=1 // pred_check
      _
    $region35: #{_residual_block_impl.4} parent=1 // pred_check_branch
      %566 = sbr.rel (0) target = $region37
    $region36: #{_residual_block_impl.4} parent=1 // pred_region
      %567 = dma.done [#allocation4], 512
    $region37: #{_residual_block_impl.4} parent=1 // pred_fallthru
      _
    // Predicated region
    $region38: #{_residual_block_impl.4} parent=1 // pred_check
      _
    $region39: #{_residual_block_impl.4} parent=1 // pred_check_branch
      %569 = sbr.rel (0) target = $region41
    $region40: #{_residual_block_impl.4} parent=1 // pred_region
      %570 = dma.done [#allocation10], 32
    $region41: #{_residual_block_impl.4} parent=1 // pred_fallthru
      _
    %571 = vsyncpa [#allocation3], 1
    %572 = vsyncpa [#allocation6], 1
    %573 = vsyncpa [#allocation4], 1
    %574 = vsyncpa [#allocation10], 1

// kernel: _residual_block_impl.5
$region0: #{_residual_block_impl.5}
  #allocation0 [shape = 'u32[]', space=smem, size = 0x4, offset = 0x4, fixed_abs, tag = 'smem constant byte address 0x4 - core index']
  #allocation1 [shape = 'u32[144,128]{1,0:T(1,128)}', space=vmem, size = 0x12000, scoped, tag = 'internal scratch']
  %s0 = inlined_call_operand.hbm [shape: f32[2,16,128], index: 0, kind: input, shape index: {}, may-alias: {0,4}]
  %s1 = inlined_call_operand.hbm [shape: f32[2,16,128], index: 1, kind: input, shape index: {}]
  %s2 = inlined_call_operand.hbm [shape: f32[1,2,128], index: 2, kind: input, shape index: {}]
  %s3 = inlined_call_operand.hbm [shape: f32[1,2,128], index: 3, kind: input, shape index: {}]
  %s4 = inlined_call_operand.hbm [shape: f32[2,16,128], index: 4, kind: output, shape index: {}, may-alias: {0,4}]
  %s5 = sld [smem:[#allocation0]]
  $region42: #{_residual_block_impl.5} parent=0
    _
  %s7 = ssub.s32 1, %s5
  %s8 = scalar_select 0, %s7, %s5
  $region1: #{_residual_block_impl.5} parent=0
    #allocation2 [shape = 'u8[16384]{0}', space=vmem, size = 0x4000, scoped, tag = 'input window, operand 0, single buffered']
    #allocation3 [shape = 's32[1]{0}', space=sflag, size = 0x4, scoped, tag = 'scoped memory for _residual_block_impl.5']
    #allocation4 [shape = 's32[1]{0}', space=sflag, size = 0x4, scoped, tag = 'scoped memory for _residual_block_impl.5']
    #allocation5 [shape = 'u8[16384]{0}', space=vmem, size = 0x4000, scoped, tag = 'input window, operand 1, single buffered']
    #allocation6 [shape = 's32[1]{0}', space=sflag, size = 0x4, scoped, tag = 'scoped memory for _residual_block_impl.5']
    #allocation7 [shape = 'u8[1024]{0}', space=vmem, size = 0x400, scoped, tag = 'input window, operand 2, single buffered']
    #allocation8 [shape = 'u8[1024]{0}', space=vmem, size = 0x400, scoped, tag = 'input window, operand 3, single buffered']
    #allocation9 [shape = 's32[1]{0}', space=sflag, size = 0x4, scoped, tag = 'scoped memory for _residual_block_impl.5']
    #allocation10 [shape = 'u8[16384]{0}', space=vmem, size = 0x4000, scoped, tag = 'output window, operand 0, single buffered']
    %9 = vsyncpa [#allocation3], 0
    %10 = vsyncpa [#allocation6], 0
    %11 = vsyncpa [#allocation9], 0
    %12 = vsyncpa [#allocation4], 0
    // Predicated region
    $region2: #{_residual_block_impl.5} parent=1 // pred_check
      _
    $region3: #{_residual_block_impl.5} parent=1 // pred_check_branch
      %14 = sbr.rel (0) target = $region5
    $region4: #{_residual_block_impl.5} parent=1 // pred_region
      %s16 = ssub.s32 512, 512
      %17 = vsyncadd [#allocation3], %s16
      %s18 = sshll.u32 [#allocation2], 4
      %s19 = int_to_ptr.vmem [resolvable:$true] %s18
      %24 = dma.hbm_to_vmem [thread:$0]  %s0, 512, %s19, [#allocation3], 128, 128, 8
    $region5: #{_residual_block_impl.5} parent=1 // pred_fallthru
      _
    // Predicated region
    $region6: #{_residual_block_impl.5} parent=1 // pred_check
      _
    $region7: #{_residual_block_impl.5} parent=1 // pred_check_branch
      %26 = sbr.rel (0) target = $region9
    $region8: #{_residual_block_impl.5} parent=1 // pred_region
      %s28 = ssub.s32 512, 512
      %29 = vsyncadd [#allocation6], %s28
      %s30 = sshll.u32 [#allocation5], 4
      %s31 = int_to_ptr.vmem [resolvable:$true] %s30
      %36 = dma.hbm_to_vmem [thread:$0]  %s1, 512, %s31, [#allocation6], 128, 128, 8
    $region9: #{_residual_block_impl.5} parent=1 // pred_fallthru
      _
    // Predicated region
    $region10: #{_residual_block_impl.5} parent=1 // pred_check
      _
    $region11: #{_residual_block_impl.5} parent=1 // pred_check_branch
      %38 = sbr.rel (0) target = $region13
    $region12: #{_residual_block_impl.5} parent=1 // pred_region
      %s40 = ssub.s32 32, 32
      %41 = vsyncadd [#allocation6], %s40
      %s43 = sshll.u32 [#allocation7], 4
      %s44 = int_to_ptr.vmem [resolvable:$true] %s43
      %46 = dma.hbm_to_vmem [thread:$0]  %s2, 32, %s44, [#allocation6]
    $region13: #{_residual_block_impl.5} parent=1 // pred_fallthru
      _
    // Predicated region
    $region14: #{_residual_block_impl.5} parent=1 // pred_check
      _
    $region15: #{_residual_block_impl.5} parent=1 // pred_check_branch
      %48 = sbr.rel (0) target = $region17
    $region16: #{_residual_block_impl.5} parent=1 // pred_region
      %s50 = ssub.s32 32, 32
      %51 = vsyncadd [#allocation9], %s50
      %s53 = sshll.u32 [#allocation8], 4
      %s54 = int_to_ptr.vmem [resolvable:$true] %s53
      %56 = dma.hbm_to_vmem [thread:$0]  %s3, 32, %s54, [#allocation9]
    $region17: #{_residual_block_impl.5} parent=1 // pred_fallthru
      _
    // Predicated region
    $region18: #{_residual_block_impl.5} parent=1 // pred_check
      _
    $region19: #{_residual_block_impl.5} parent=1 // pred_check_branch
      %58 = sbr.rel (0) target = $region21
    $region20: #{_residual_block_impl.5} parent=1 // pred_region
      %59 = dma.done [#allocation3], 512
    $region21: #{_residual_block_impl.5} parent=1 // pred_fallthru
      _
    // Predicated region
    $region22: #{_residual_block_impl.5} parent=1 // pred_check
      _
    $region23: #{_residual_block_impl.5} parent=1 // pred_check_branch
      %61 = sbr.rel (0) target = $region25
    $region24: #{_residual_block_impl.5} parent=1 // pred_region
      %62 = dma.done [#allocation6], 512
    $region25: #{_residual_block_impl.5} parent=1 // pred_fallthru
      _
    // Predicated region
    $region26: #{_residual_block_impl.5} parent=1 // pred_check
      _
    $region27: #{_residual_block_impl.5} parent=1 // pred_check_branch
      %64 = sbr.rel (0) target = $region29
    $region28: #{_residual_block_impl.5} parent=1 // pred_region
      %65 = dma.done [#allocation6], 32
    $region29: #{_residual_block_impl.5} parent=1 // pred_fallthru
      _
    // Predicated region
    $region30: #{_residual_block_impl.5} parent=1 // pred_check
      _
    $region31: #{_residual_block_impl.5} parent=1 // pred_check_branch
      %67 = sbr.rel (0) target = $region33
    $region32: #{_residual_block_impl.5} parent=1 // pred_region
      %68 = dma.done [#allocation9], 32
    $region33: #{_residual_block_impl.5} parent=1 // pred_fallthru
      _
    %v69 = vld [vmem:[#allocation7] sm:$0x3]
    %v70 = vld [vmem:[#allocation2] sm:$0xff]
    %v71 = vld [vmem:[#allocation2 + $0x8] sm:$0xff]
    %v72 = vld [vmem:[#allocation2 + $0x10] sm:$0xff]
    %v73 = vld [vmem:[#allocation2 + $0x18] sm:$0xff]
    %v74 = vlaneseq
    %v75 = vshrl.u32 %v74, 7
    %v76 = vsub.s32 0, %v75
    %v77 = vrot.slane %v69, %v76
    %v78 = vmul.f32 %v70, %v77
    %v79 = vmul.f32 %v71, %v77
    %v80 = vmul.f32 %v72, %v77
    %v81 = vmul.f32 %v73, %v77
    %v82 = vlaneseq
    %v83 = vshrl.u32 %v82, 7
    %v84 = vsub.s32 1, %v83
    %v85 = vrot.slane %v69, %v84
    %v86 = vadd.f32 %v78, %v85
    %v87 = vadd.f32 %v79, %v85
    %v88 = vadd.f32 %v80, %v85
    %v89 = vadd.f32 %v81, %v85
    %v90 = vld [vmem:[#allocation5] sm:$0xff]
    %v91 = vld [vmem:[#allocation5 + $0x8] sm:$0xff]
    %v92 = vld [vmem:[#allocation5 + $0x10] sm:$0xff]
    %v93 = vld [vmem:[#allocation5 + $0x18] sm:$0xff]
    %v94 = vld [vmem:[#allocation8] sm:$0x3]
    %v95 = vlaneseq
    %v96 = vshrl.u32 %v95, 7
    %v97 = vsub.s32 0, %v96
    %v98 = vrot.slane %v94, %v97
    %v99 = vmul.f32 %v90, %v98
    %v100 = vmul.f32 %v91, %v98
    %v101 = vmul.f32 %v92, %v98
    %v102 = vmul.f32 %v93, %v98
    %v103 = vlaneseq
    %v104 = vshrl.u32 %v103, 7
    %v105 = vsub.s32 1, %v104
    %v106 = vrot.slane %v94, %v105
    %v107 = vadd.f32 %v99, %v106
    %v108 = vadd.f32 %v100, %v106
    %v109 = vadd.f32 %v101, %v106
    %v110 = vadd.f32 %v102, %v106
    %v111 = vadd.f32 %v86, %v107
    %v112 = vadd.f32 %v87, %v108
    %v113 = vadd.f32 %v88, %v109
    %v114 = vadd.f32 %v89, %v110
    %v115 = vmax.f32 %v111, 0.0
    %v116 = vmax.f32 %v112, 0.0
    %v117 = vmax.f32 %v113, 0.0
    %v118 = vmax.f32 %v114, 0.0
    %119 = vst [vmem:[#allocation10] sm:$0xff] %v115
    %120 = vst [vmem:[#allocation10 + $0x8] sm:$0xff] %v116
    %121 = vst [vmem:[#allocation10 + $0x10] sm:$0xff] %v117
    %122 = vst [vmem:[#allocation10 + $0x18] sm:$0xff] %v118
    // Predicated region
    $region34: #{_residual_block_impl.5} parent=1 // pred_check
      _
    $region35: #{_residual_block_impl.5} parent=1 // pred_check_branch
      %124 = sbr.rel (0) target = $region37
    $region36: #{_residual_block_impl.5} parent=1 // pred_region
      %s126 = ssub.s32 512, 512
      %127 = vsyncadd [#allocation4], %s126
      %s128 = sshll.u32 [#allocation10], 4
      %s129 = int_to_ptr.vmem [resolvable:$true] %s128
      %134 = dma.vmem_to_hbm [thread:$0]  %s129, 512, %s4, [#allocation4], 128, 128, 8
    $region37: #{_residual_block_impl.5} parent=1 // pred_fallthru
      _
    // Predicated region
    $region38: #{_residual_block_impl.5} parent=1 // pred_check
      _
    $region39: #{_residual_block_impl.5} parent=1 // pred_check_branch
      %136 = sbr.rel (0) target = $region41
    $region40: #{_residual_block_impl.5} parent=1 // pred_region
      %137 = dma.done [#allocation4], 512
    $region41: #{_residual_block_impl.5} parent=1 // pred_fallthru
      _
    %138 = vsyncpa [#allocation3], 1
    %139 = vsyncpa [#allocation6], 1
    %140 = vsyncpa [#allocation9], 1
    %141 = vsyncpa [#allocation4], 1

// kernel: _residual_block_impl.3
$region0: #{_residual_block_impl.3}
  #allocation0 [shape = 'u32[]', space=smem, size = 0x4, offset = 0x4, fixed_abs, tag = 'smem constant byte address 0x4 - core index']
  #allocation1 [shape = 'u32[144,128]{1,0:T(1,128)}', space=vmem, size = 0x12000, scoped, tag = 'internal scratch']
  %s0 = inlined_call_operand.hbm [shape: f32[2,16,128], index: 0, kind: input, shape index: {}]
  %s1 = inlined_call_operand.hbm [shape: f32[3,128,128], index: 1, kind: input, shape index: {}]
  %s2 = inlined_call_operand.hbm [shape: f32[128,128], index: 2, kind: input, shape index: {}]
  %s3 = inlined_call_operand.hbm [shape: f32[2,16,128], index: 3, kind: output, shape index: {0}]
  %s4 = inlined_call_operand.hbm [shape: f32[2,16,128], index: 4, kind: output, shape index: {1}]
  %s5 = inlined_call_operand.hbm [shape: f32[1,2,128], index: 5, kind: output, shape index: {2}]
  %s6 = inlined_call_operand.hbm [shape: f32[1,2,128], index: 6, kind: output, shape index: {3}]
  %7 = xla_tuple %s3, %s4, %s5, %s6
  %s8 = sld [smem:[#allocation0]]
  $region58: #{_residual_block_impl.3} parent=0
    _
  %s10 = ssub.s32 1, %s8
  %s11 = scalar_select 0, %s10, %s8
  $region1: #{_residual_block_impl.3} parent=0
    #allocation2 [shape = 'u8[16384]{0}', space=vmem, size = 0x4000, scoped, tag = 'input window, operand 0, single buffered']
    #allocation3 [shape = 's32[1]{0}', space=sflag, size = 0x4, scoped, tag = 'scoped memory for _residual_block_impl.3']
    #allocation4 [shape = 's32[1]{0}', space=sflag, size = 0x4, scoped, tag = 'scoped memory for _residual_block_impl.3']
    #allocation5 [shape = 'u8[196608]{0}', space=vmem, size = 0x30000, scoped, tag = 'input window, operand 1, single buffered']
    #allocation6 [shape = 's32[1]{0}', space=sflag, size = 0x4, scoped, tag = 'scoped memory for _residual_block_impl.3']
    #allocation7 [shape = 'u8[65536]{0}', space=vmem, size = 0x10000, scoped, tag = 'input window, operand 2, single buffered']
    #allocation8 [shape = 'u8[16384]{0}', space=vmem, size = 0x4000, scoped, tag = 'output window, operand 0, single buffered']
    #allocation9 [shape = 'u8[16384]{0}', space=vmem, size = 0x4000, scoped, tag = 'output window, operand 1, single buffered']
    #allocation10 [shape = 's32[1]{0}', space=sflag, size = 0x4, scoped, tag = 'scoped memory for _residual_block_impl.3']
    #allocation11 [shape = 'u8[1024]{0}', space=vmem, size = 0x400, scoped, tag = 'output window, operand 2, single buffered']
    #allocation12 [shape = 'u8[1024]{0}', space=vmem, size = 0x400, scoped, tag = 'output window, operand 3, single buffered']
    #allocation13 [shape = 's32[1]{0}', space=sflag, size = 0x4, scoped, tag = 'scoped memory for _residual_block_impl.3']
    %12 = vsyncpa [#allocation3], 0
    %13 = vsyncpa [#allocation6], 0
    %14 = vsyncpa [#allocation4], 0
    %15 = vsyncpa [#allocation10], 0
    %16 = vsyncpa [#allocation13], 0
    // Predicated region
    $region2: #{_residual_block_impl.3} parent=1 // pred_check
      _
    $region3: #{_residual_block_impl.3} parent=1 // pred_check_branch
      %18 = sbr.rel (0) target = $region5
    $region4: #{_residual_block_impl.3} parent=1 // pred_region
      %s20 = ssub.s32 512, 512
      %21 = vsyncadd [#allocation3], %s20
      %s22 = sshll.u32 [#allocation2], 4
      %s23 = int_to_ptr.vmem [resolvable:$true] %s22
      %28 = dma.hbm_to_vmem [thread:$0]  %s0, 512, %s23, [#allocation3], 128, 128, 8
    $region5: #{_residual_block_impl.3} parent=1 // pred_fallthru
      _
    // Predicated region
    $region6: #{_residual_block_impl.3} parent=1 // pred_check
      _
    $region7: #{_residual_block_impl.3} parent=1 // pred_check_branch
      %30 = sbr.rel (0) target = $region9
    $region8: #{_residual_block_impl.3} parent=1 // pred_region
      %s32 = ssub.s32 6144, 6144
      %33 = vsyncadd [#allocation6], %s32
      %s34 = sshll.u32 [#allocation5], 4
      %s35 = int_to_ptr.vmem [resolvable:$true] %s34
      %40 = dma.hbm_to_vmem [thread:$0]  %s1, 6144, %s35, [#allocation6], 128, 128, 8
    $region9: #{_residual_block_impl.3} parent=1 // pred_fallthru
      _
    // Predicated region
    $region10: #{_residual_block_impl.3} parent=1 // pred_check
      _
    $region11: #{_residual_block_impl.3} parent=1 // pred_check_branch
      %42 = sbr.rel (0) target = $region13
    $region12: #{_residual_block_impl.3} parent=1 // pred_region
      %s44 = ssub.s32 2048, 2048
      %45 = vsyncadd [#allocation6], %s44
      %s46 = sshll.u32 [#allocation7], 4
      %s47 = int_to_ptr.vmem [resolvable:$true] %s46
      %52 = dma.hbm_to_vmem [thread:$0]  %s2, 2048, %s47, [#allocation6], 128, 128, 8
    $region13: #{_residual_block_impl.3} parent=1 // pred_fallthru
      _
    // Predicated region
    $region14: #{_residual_block_impl.3} parent=1 // pred_check
      _
    $region15: #{_residual_block_impl.3} parent=1 // pred_check_branch
      %54 = sbr.rel (0) target = $region17
    $region16: #{_residual_block_impl.3} parent=1 // pred_region
      %55 = dma.done [#allocation3], 512
    $region17: #{_residual_block_impl.3} parent=1 // pred_fallthru
      _
    // Predicated region
    $region18: #{_residual_block_impl.3} parent=1 // pred_check
      _
    $region19: #{_residual_block_impl.3} parent=1 // pred_check_branch
      %57 = sbr.rel (0) target = $region21
    $region20: #{_residual_block_impl.3} parent=1 // pred_region
      %58 = dma.done [#allocation6], 6144
    $region21: #{_residual_block_impl.3} parent=1 // pred_fallthru
      _
    // Predicated region
    $region22: #{_residual_block_impl.3} parent=1 // pred_check
      _
    $region23: #{_residual_block_impl.3} parent=1 // pred_check_branch
      %60 = sbr.rel (0) target = $region25
    $region24: #{_residual_block_impl.3} parent=1 // pred_region
      %61 = dma.done [#allocation6], 2048
    $region25: #{_residual_block_impl.3} parent=1 // pred_fallthru
      _
    %v62 = vld [vmem:[#allocation2] sm:$0xff]
    %v63 = vld [vmem:[#allocation2 + $0x8] sm:$0xff]
    %v64 = vld [vmem:[#allocation2 + $0x10] sm:$0xff]
    %v65 = vld [vmem:[#allocation2 + $0x18] sm:$0xff]
    %s66 = scalar_lea.vmem [#allocation5], 128
    %v67 = vld [vmem:[%s66] sm:$0xff]
    %v68 = vld [vmem:[%s66 + $0x8] sm:$0xff]
    %v69 = vld [vmem:[%s66 + $0x10] sm:$0xff]
    %v70 = vld [vmem:[%s66 + $0x18] sm:$0xff]
    %v71 = vld [vmem:[%s66 + $0x20] sm:$0xff]
    %v72 = vld [vmem:[%s66 + $0x28] sm:$0xff]
    %v73 = vld [vmem:[%s66 + $0x30] sm:$0xff]
    %v74 = vld [vmem:[%s66 + $0x38] sm:$0xff]
    %v75 = vld [vmem:[%s66 + $0x40] sm:$0xff]
    %v76 = vld [vmem:[%s66 + $0x48] sm:$0xff]
    %v77 = vld [vmem:[%s66 + $0x50] sm:$0xff]
    %v78 = vld [vmem:[%s66 + $0x58] sm:$0xff]
    %v79 = vld [vmem:[%s66 + $0x60] sm:$0xff]
    %v80 = vld [vmem:[%s66 + $0x68] sm:$0xff]
    %v81 = vld [vmem:[%s66 + $0x70] sm:$0xff]
    %v82 = vld [vmem:[%s66 + $0x78] sm:$0xff]
    %v83 = vld [vmem:[#allocation5] sm:$0xff]
    %v84 = vld [vmem:[#allocation5 + $0x8] sm:$0xff]
    %v85 = vld [vmem:[#allocation5 + $0x10] sm:$0xff]
    %v86 = vld [vmem:[#allocation5 + $0x18] sm:$0xff]
    %v87 = vld [vmem:[#allocation5 + $0x20] sm:$0xff]
    %v88 = vld [vmem:[#allocation5 + $0x28] sm:$0xff]
    %v89 = vld [vmem:[#allocation5 + $0x30] sm:$0xff]
    %v90 = vld [vmem:[#allocation5 + $0x38] sm:$0xff]
    %v91 = vld [vmem:[#allocation5 + $0x40] sm:$0xff]
    %v92 = vld [vmem:[#allocation5 + $0x48] sm:$0xff]
    %v93 = vld [vmem:[#allocation5 + $0x50] sm:$0xff]
    %v94 = vld [vmem:[#allocation5 + $0x58] sm:$0xff]
    %v95 = vld [vmem:[#allocation5 + $0x60] sm:$0xff]
    %v96 = vld [vmem:[#allocation5 + $0x68] sm:$0xff]
    %v97 = vld [vmem:[#allocation5 + $0x70] sm:$0xff]
    %v98 = vld [vmem:[#allocation5 + $0x78] sm:$0xff]
    %99 = vmatprep.subr.mxu0 0.0
    %100 = vmatpush1.msra.mxu0 %v83
    %101 = vmatprep.subr.mxu0 0.0
    %102 = vmatpush1.msra.mxu0 %v84
    %103 = vmatprep.subr.mxu0 0.0
    %104 = vmatpush1.msra.mxu0 %v85
    %105 = vmatprep.subr.mxu0 0.0
    %106 = vmatpush1.msra.mxu0 %v86
    %107 = vmatprep.subr.mxu0 0.0
    %108 = vmatpush1.msra.mxu0 %v87
    %109 = vmatprep.subr.mxu0 0.0
    %110 = vmatpush1.msra.mxu0 %v88
    %111 = vmatprep.subr.mxu0 0.0
    %112 = vmatpush1.msra.mxu0 %v89
    %113 = vmatprep.subr.mxu0 0.0
    %114 = vmatpush1.msra.mxu0 %v90
    %115 = vmatprep.subr.mxu0 0.0
    %116 = vmatpush1.msra.mxu0 %v91
    %117 = vmatprep.subr.mxu0 0.0
    %118 = vmatpush1.msra.mxu0 %v92
    %119 = vmatprep.subr.mxu0 0.0
    %120 = vmatpush1.msra.mxu0 %v93
    %121 = vmatprep.subr.mxu0 0.0
    %122 = vmatpush1.msra.mxu0 %v94
    %123 = vmatprep.subr.mxu0 0.0
    %124 = vmatpush1.msra.mxu0 %v95
    %125 = vmatprep.subr.mxu0 0.0
    %126 = vmatpush1.msra.mxu0 %v96
    %127 = vmatprep.subr.mxu0 0.0
    %128 = vmatpush1.msra.mxu0 %v97
    %129 = vmatprep.subr.mxu0 0.0
    %130 = vmatpush1.msra.mxu0 %v98
    %131 = vmatprep.subr.mxu0 0.0
    %132 = vmatpush1.msra.mxu0 0.0
    %133 = vmatprep.subr.mxu0 0.0
    %134 = vmatpush1.msra.mxu0 0.0
    %135 = vmatprep.subr.mxu0 0.0
    %136 = vmatpush1.msra.mxu0 0.0
    %137 = vmatprep.subr.mxu0 0.0
    %138 = vmatpush1.msra.mxu0 0.0
    %139 = vmatprep.subr.mxu0 0.0
    %140 = vmatpush1.msra.mxu0 0.0
    %141 = vmatprep.subr.mxu0 0.0
    %142 = vmatpush1.msra.mxu0 0.0
    %143 = vmatprep.subr.mxu0 0.0
    %144 = vmatpush1.msra.mxu0 0.0
    %145 = vmatprep.subr.mxu0 0.0
    %146 = vmatpush1.msra.mxu0 0.0
    %147 = vmatprep.subr.mxu0 0.0
    %148 = vmatpush1.msra.mxu0 0.0
    %149 = vmatprep.subr.mxu0 0.0
    %150 = vmatpush1.msra.mxu0 0.0
    %151 = vmatprep.subr.mxu0 0.0
    %152 = vmatpush1.msra.mxu0 0.0
    %153 = vmatprep.subr.mxu0 0.0
    %154 = vmatpush1.msra.mxu0 0.0
    %155 = vmatprep.subr.mxu0 0.0
    %156 = vmatpush1.msra.mxu0 0.0
    %157 = vmatprep.subr.mxu0 0.0
    %158 = vmatpush1.msra.mxu0 0.0
    %159 = vmatprep.subr.mxu0 0.0
    %160 = vmatpush1.msra.mxu0 0.0
    %161 = vmatprep.subr.mxu0 0.0
    %162 = vmatpush1.msra.mxu0 0.0
    %163 = vmatprep.mubr.f32.mxu0 0.0
    %164 = vmatmul.mubr.f32.gmra.mrb[0].mxu0 %v62
    %v165 = vpop.f32.mrb[0].mxu0
    %v166 = vadd.f32 0.0, %v165
    %v167 = vpop.f32.mrb[0].mxu0
    %168 = vmatprep.mubr.f32.mxu0 0.0
    %169 = vmatmul.mubr.f32.gmra.mrb[0].mxu0 %v63
    %v170 = vpop.f32.mrb[0].mxu0
    %v171 = vadd.f32 0.0, %v170
    %v172 = vpop.f32.mrb[0].mxu0
    %173 = vmatprep.mubr.f32.mxu0 0.0
    %174 = vmatmul.mubr.f32.gmra.mrb[0].mxu0 %v64
    %v175 = vpop.f32.mrb[0].mxu0
    %v176 = vadd.f32 0.0, %v175
    %v177 = vpop.f32.mrb[0].mxu0
    %178 = vmatprep.mubr.f32.mxu0 0.0
    %179 = vmatmul.mubr.f32.gmra.mrb[0].mxu0 %v65
    %v180 = vpop.f32.mrb[0].mxu0
    %v181 = vadd.f32 0.0, %v180
    %v182 = vpop.f32.mrb[0].mxu0
    %183 = vdwg.mxu0
    %v184 = vlaneseq
    %v185 = vshrl.u32 %v184, 7
    %v186 = vadd.s32 %v185, 8
    %v187 = vadd.s32 %v185, 16
    %v188 = vadd.s32 %v185, 24
    %vm189 = vcmp.lt.s32.totalorder %v185, 0
    %v190 = vsub.s32 0, %v185
    %v191 = vsel %vm189, %v190, %v185
    %v192 = vshrl.u32 %v191, 4
    %v193 = vand.u32 %v191, 15
    %v194 = vsub.s32 0, %v193
    %v195 = vsel %vm189, %v194, %v193
    %vm196 = vcmp.lt.s32.totalorder %v186, 0
    %v197 = vsub.s32 0, %v186
    %v198 = vsel %vm196, %v197, %v186
    %v199 = vshrl.u32 %v198, 4
    %v200 = vand.u32 %v198, 15
    %v201 = vsub.s32 0, %v200
    %v202 = vsel %vm196, %v201, %v200
    %vm203 = vcmp.lt.s32.totalorder %v187, 0
    %v204 = vsub.s32 0, %v187
    %v205 = vsel %vm203, %v204, %v187
    %v206 = vshrl.u32 %v205, 4
    %v207 = vand.u32 %v205, 15
    %v208 = vsub.s32 0, %v207
    %v209 = vsel %vm203, %v208, %v207
    %vm210 = vcmp.lt.s32.totalorder %v188, 0
    %v211 = vsub.s32 0, %v188
    %v212 = vsel %vm210, %v211, %v188
    %v213 = vshrl.u32 %v212, 4
    %v214 = vand.u32 %v212, 15
    %v215 = vsub.s32 0, %v214
    %v216 = vsel %vm210, %v215, %v214
    %vm217 = vcmp.ne.s32.totalorder %v195, 0
    %vm218 = vcmp.ne.s32.totalorder %v202, 0
    %vm219 = vcmp.ne.s32.totalorder %v209, 0
    %vm220 = vcmp.ne.s32.totalorder %v216, 0
    %vm221 = vcmp.lt.s32.totalorder %v195, 0
    %vm222 = vcmp.lt.s32.totalorder %v202, 0
    %vm223 = vcmp.lt.s32.totalorder %v209, 0
    %vm224 = vcmp.lt.s32.totalorder %v216, 0
    %vm225 = vmand %vm221, %vm217
    %vm226 = vmand %vm222, %vm218
    %vm227 = vmand %vm223, %vm219
    %vm228 = vmand %vm224, %vm220
    %v229 = vadd.s32 %v195, 16
    %v230 = vadd.s32 %v202, 16
    %v231 = vadd.s32 %v209, 16
    %v232 = vadd.s32 %v216, 16
    %v233 = vsel %vm225, %v229, %v195
    %v234 = vsel %vm226, %v230, %v202
    %v235 = vsel %vm227, %v231, %v209
    %v236 = vsel %vm228, %v232, %v216
    %vm241 = vcmask 1040384
    %v242 = vrot.slane %v166, 7
    %v243 = vrot.slane %v171, 7
    %v244 = vsel %vm241, %v242, %v243
    %v245 = vrot.slane %v176, 7
    %v246 = vsel %vm241, %v243, %v245
    %v247 = vrot.slane %v181, 7
    %v248 = vsel %vm241, %v245, %v247
    %v253 = vsel %vm241, 0.0, %v242
    %vm254 = vcmp.ne.s32.totalorder %v233, 0
    %vm255 = vcmp.ne.s32.totalorder %v234, 0
    %vm256 = vcmp.ne.s32.totalorder %v235, 0
    %vm257 = vcmp.ne.s32.totalorder %v236, 0
    %v258 = vsel %vm254, 1, 0
    %v259 = vsel %vm255, 1, 0
    %v260 = vsel %vm256, 1, 0
    %v261 = vsel %vm257, 1, 0
    %vm262 = vcmp.eq.s32.totalorder %v258, 1
    %vm263 = vcmp.eq.s32.totalorder %v259, 1
    %vm264 = vcmp.eq.s32.totalorder %v260, 1
    %vm265 = vcmp.eq.s32.totalorder %v261, 1
    %v266 = vsel %vm262, %v253, 0.0
    %v267 = vsel %vm263, %v244, 0.0
    %v268 = vsel %vm264, %v246, 0.0
    %v269 = vsel %vm265, %v248, 0.0
    %270 = vmatprep.subr.mxu0 0.0
    %271 = vmatpush1.msra.mxu0 %v67
    %272 = vmatprep.subr.mxu0 0.0
    %273 = vmatpush1.msra.mxu0 %v68
    %274 = vmatprep.subr.mxu0 0.0
    %275 = vmatpush1.msra.mxu0 %v69
    %276 = vmatprep.subr.mxu0 0.0
    %277 = vmatpush1.msra.mxu0 %v70
    %278 = vmatprep.subr.mxu0 0.0
    %279 = vmatpush1.msra.mxu0 %v71
    %280 = vmatprep.subr.mxu0 0.0
    %281 = vmatpush1.msra.mxu0 %v72
    %282 = vmatprep.subr.mxu0 0.0
    %283 = vmatpush1.msra.mxu0 %v73
    %284 = vmatprep.subr.mxu0 0.0
    %285 = vmatpush1.msra.mxu0 %v74
    %286 = vmatprep.subr.mxu0 0.0
    %287 = vmatpush1.msra.mxu0 %v75
    %288 = vmatprep.subr.mxu0 0.0
    %289 = vmatpush1.msra.mxu0 %v76
    %290 = vmatprep.subr.mxu0 0.0
    %291 = vmatpush1.msra.mxu0 %v77
    %292 = vmatprep.subr.mxu0 0.0
    %293 = vmatpush1.msra.mxu0 %v78
    %294 = vmatprep.subr.mxu0 0.0
    %295 = vmatpush1.msra.mxu0 %v79
    %296 = vmatprep.subr.mxu0 0.0
    %297 = vmatpush1.msra.mxu0 %v80
    %298 = vmatprep.subr.mxu0 0.0
    %299 = vmatpush1.msra.mxu0 %v81
    %300 = vmatprep.subr.mxu0 0.0
    %301 = vmatpush1.msra.mxu0 %v82
    %302 = vmatprep.subr.mxu0 0.0
    %303 = vmatpush1.msra.mxu0 0.0
    %304 = vmatprep.subr.mxu0 0.0
    %305 = vmatpush1.msra.mxu0 0.0
    %306 = vmatprep.subr.mxu0 0.0
    %307 = vmatpush1.msra.mxu0 0.0
    %308 = vmatprep.subr.mxu0 0.0
    %309 = vmatpush1.msra.mxu0 0.0
    %310 = vmatprep.subr.mxu0 0.0
    %311 = vmatpush1.msra.mxu0 0.0
    %312 = vmatprep.subr.mxu0 0.0
    %313 = vmatpush1.msra.mxu0 0.0
    %314 = vmatprep.subr.mxu0 0.0
    %315 = vmatpush1.msra.mxu0 0.0
    %316 = vmatprep.subr.mxu0 0.0
    %317 = vmatpush1.msra.mxu0 0.0
    %318 = vmatprep.subr.mxu0 0.0
    %319 = vmatpush1.msra.mxu0 0.0
    %320 = vmatprep.subr.mxu0 0.0
    %321 = vmatpush1.msra.mxu0 0.0
    %322 = vmatprep.subr.mxu0 0.0
    %323 = vmatpush1.msra.mxu0 0.0
    %324 = vmatprep.subr.mxu0 0.0
    %325 = vmatpush1.msra.mxu0 0.0
    %326 = vmatprep.subr.mxu0 0.0
    %327 = vmatpush1.msra.mxu0 0.0
    %328 = vmatprep.subr.mxu0 0.0
    %329 = vmatpush1.msra.mxu0 0.0
    %330 = vmatprep.subr.mxu0 0.0
    %331 = vmatpush1.msra.mxu0 0.0
    %332 = vmatprep.subr.mxu0 0.0
    %333 = vmatpush1.msra.mxu0 0.0
    %334 = vmatprep.mubr.f32.mxu0 0.0
    %335 = vmatmul.mubr.f32.gmra.mrb[0].mxu0 %v62
    %v336 = vpop.f32.mrb[0].mxu0
    %v337 = vadd.f32 %v266, %v336
    %v338 = vpop.f32.mrb[0].mxu0
    %339 = vmatprep.mubr.f32.mxu0 0.0
    %340 = vmatmul.mubr.f32.gmra.mrb[0].mxu0 %v63
    %v341 = vpop.f32.mrb[0].mxu0
    %v342 = vadd.f32 %v267, %v341
    %v343 = vpop.f32.mrb[0].mxu0
    %344 = vmatprep.mubr.f32.mxu0 0.0
    %345 = vmatmul.mubr.f32.gmra.mrb[0].mxu0 %v64
    %v346 = vpop.f32.mrb[0].mxu0
    %v347 = vadd.f32 %v268, %v346
    %v348 = vpop.f32.mrb[0].mxu0
    %349 = vmatprep.mubr.f32.mxu0 0.0
    %350 = vmatmul.mubr.f32.gmra.mrb[0].mxu0 %v65
    %v351 = vpop.f32.mrb[0].mxu0
    %v352 = vadd.f32 %v269, %v351
    %v353 = vpop.f32.mrb[0].mxu0
    %354 = vdwg.mxu0
    %s355 = scalar_lea.vmem [#allocation5], 256
    %v356 = vld [vmem:[%s355] sm:$0xff]
    %v357 = vld [vmem:[%s355 + $0x8] sm:$0xff]
    %v358 = vld [vmem:[%s355 + $0x10] sm:$0xff]
    %v359 = vld [vmem:[%s355 + $0x18] sm:$0xff]
    %v360 = vld [vmem:[%s355 + $0x20] sm:$0xff]
    %v361 = vld [vmem:[%s355 + $0x28] sm:$0xff]
    %v362 = vld [vmem:[%s355 + $0x30] sm:$0xff]
    %v363 = vld [vmem:[%s355 + $0x38] sm:$0xff]
    %v364 = vld [vmem:[%s355 + $0x40] sm:$0xff]
    %v365 = vld [vmem:[%s355 + $0x48] sm:$0xff]
    %v366 = vld [vmem:[%s355 + $0x50] sm:$0xff]
    %v367 = vld [vmem:[%s355 + $0x58] sm:$0xff]
    %v368 = vld [vmem:[%s355 + $0x60] sm:$0xff]
    %v369 = vld [vmem:[%s355 + $0x68] sm:$0xff]
    %v370 = vld [vmem:[%s355 + $0x70] sm:$0xff]
    %v371 = vld [vmem:[%s355 + $0x78] sm:$0xff]
    %372 = vmatprep.subr.mxu0 0.0
    %373 = vmatpush1.msra.mxu0 %v356
    %374 = vmatprep.subr.mxu0 0.0
    %375 = vmatpush1.msra.mxu0 %v357
    %376 = vmatprep.subr.mxu0 0.0
    %377 = vmatpush1.msra.mxu0 %v358
    %378 = vmatprep.subr.mxu0 0.0
    %379 = vmatpush1.msra.mxu0 %v359
    %380 = vmatprep.subr.mxu0 0.0
    %381 = vmatpush1.msra.mxu0 %v360
    %382 = vmatprep.subr.mxu0 0.0
    %383 = vmatpush1.msra.mxu0 %v361
    %384 = vmatprep.subr.mxu0 0.0
    %385 = vmatpush1.msra.mxu0 %v362
    %386 = vmatprep.subr.mxu0 0.0
    %387 = vmatpush1.msra.mxu0 %v363
    %388 = vmatprep.subr.mxu0 0.0
    %389 = vmatpush1.msra.mxu0 %v364
    %390 = vmatprep.subr.mxu0 0.0
    %391 = vmatpush1.msra.mxu0 %v365
    %392 = vmatprep.subr.mxu0 0.0
    %393 = vmatpush1.msra.mxu0 %v366
    %394 = vmatprep.subr.mxu0 0.0
    %395 = vmatpush1.msra.mxu0 %v367
    %396 = vmatprep.subr.mxu0 0.0
    %397 = vmatpush1.msra.mxu0 %v368
    %398 = vmatprep.subr.mxu0 0.0
    %399 = vmatpush1.msra.mxu0 %v369
    %400 = vmatprep.subr.mxu0 0.0
    %401 = vmatpush1.msra.mxu0 %v370
    %402 = vmatprep.subr.mxu0 0.0
    %403 = vmatpush1.msra.mxu0 %v371
    %404 = vmatprep.subr.mxu0 0.0
    %405 = vmatpush1.msra.mxu0 0.0
    %406 = vmatprep.subr.mxu0 0.0
    %407 = vmatpush1.msra.mxu0 0.0
    %408 = vmatprep.subr.mxu0 0.0
    %409 = vmatpush1.msra.mxu0 0.0
    %410 = vmatprep.subr.mxu0 0.0
    %411 = vmatpush1.msra.mxu0 0.0
    %412 = vmatprep.subr.mxu0 0.0
    %413 = vmatpush1.msra.mxu0 0.0
    %414 = vmatprep.subr.mxu0 0.0
    %415 = vmatpush1.msra.mxu0 0.0
    %416 = vmatprep.subr.mxu0 0.0
    %417 = vmatpush1.msra.mxu0 0.0
    %418 = vmatprep.subr.mxu0 0.0
    %419 = vmatpush1.msra.mxu0 0.0
    %420 = vmatprep.subr.mxu0 0.0
    %421 = vmatpush1.msra.mxu0 0.0
    %422 = vmatprep.subr.mxu0 0.0
    %423 = vmatpush1.msra.mxu0 0.0
    %424 = vmatprep.subr.mxu0 0.0
    %425 = vmatpush1.msra.mxu0 0.0
    %426 = vmatprep.subr.mxu0 0.0
    %427 = vmatpush1.msra.mxu0 0.0
    %428 = vmatprep.subr.mxu0 0.0
    %429 = vmatpush1.msra.mxu0 0.0
    %430 = vmatprep.subr.mxu0 0.0
    %431 = vmatpush1.msra.mxu0 0.0
    %432 = vmatprep.subr.mxu0 0.0
    %433 = vmatpush1.msra.mxu0 0.0
    %434 = vmatprep.subr.mxu0 0.0
    %435 = vmatpush1.msra.mxu0 0.0
    %436 = vmatprep.mubr.f32.mxu0 0.0
    %437 = vmatmul.mubr.f32.gmra.mrb[0].mxu0 %v62
    %v438 = vpop.f32.mrb[0].mxu0
    %v439 = vadd.f32 0.0, %v438
    %v440 = vpop.f32.mrb[0].mxu0
    %441 = vmatprep.mubr.f32.mxu0 0.0
    %442 = vmatmul.mubr.f32.gmra.mrb[0].mxu0 %v63
    %v443 = vpop.f32.mrb[0].mxu0
    %v444 = vadd.f32 0.0, %v443
    %v445 = vpop.f32.mrb[0].mxu0
    %446 = vmatprep.mubr.f32.mxu0 0.0
    %447 = vmatmul.mubr.f32.gmra.mrb[0].mxu0 %v64
    %v448 = vpop.f32.mrb[0].mxu0
    %v449 = vadd.f32 0.0, %v448
    %v450 = vpop.f32.mrb[0].mxu0
    %451 = vmatprep.mubr.f32.mxu0 0.0
    %452 = vmatmul.mubr.f32.gmra.mrb[0].mxu0 %v65
    %v453 = vpop.f32.mrb[0].mxu0
    %v454 = vadd.f32 0.0, %v453
    %v455 = vpop.f32.mrb[0].mxu0
    %456 = vdwg.mxu0
    %vm461 = vcmask 1046528
    %v462 = vrot.slane %v439, 1
    %v463 = vrot.slane %v444, 1
    %v464 = vsel %vm461, %v462, %v463
    %v465 = vrot.slane %v449, 1
    %v466 = vsel %vm461, %v463, %v465
    %v467 = vrot.slane %v454, 1
    %v468 = vsel %vm461, %v465, %v467
    %v473 = vsel %vm461, %v467, 0.0
    %vm474 = vcmp.ne.s32.totalorder %v233, 15
    %vm475 = vcmp.ne.s32.totalorder %v234, 15
    %vm476 = vcmp.ne.s32.totalorder %v235, 15
    %vm477 = vcmp.ne.s32.totalorder %v236, 15
    %v478 = vsel %vm474, 1, 0
    %v479 = vsel %vm475, 1, 0
    %v480 = vsel %vm476, 1, 0
    %v481 = vsel %vm477, 1, 0
    %vm482 = vcmp.eq.s32.totalorder %v478, 1
    %vm483 = vcmp.eq.s32.totalorder %v479, 1
    %vm484 = vcmp.eq.s32.totalorder %v480, 1
    %vm485 = vcmp.eq.s32.totalorder %v481, 1
    %v486 = vsel %vm482, %v464, 0.0
    %v487 = vsel %vm483, %v466, 0.0
    %v488 = vsel %vm484, %v468, 0.0
    %v489 = vsel %vm485, %v473, 0.0
    %v490 = vadd.f32 %v337, %v486
    %v491 = vadd.f32 %v342, %v487
    %v492 = vadd.f32 %v347, %v488
    %v493 = vadd.f32 %v352, %v489
    %494 = vst [vmem:[#allocation8] sm:$0xff] %v490
    %495 = vst [vmem:[#allocation8 + $0x8] sm:$0xff] %v491
    %496 = vst [vmem:[#allocation8 + $0x10] sm:$0xff] %v492
    %497 = vst [vmem:[#allocation8 + $0x18] sm:$0xff] %v493
    %v498 = vadd.f32 %v490, %v491
    %v499 = vadd.f32 %v498, %v492
    %v500 = vadd.f32 %v499, %v493
    %v501 = vrot.slane %v500, 4
    %v502 = vadd.f32 %v500, %v501
    %v503 = vrot.slane %v502, 2
    %v504 = vadd.f32 %v502, %v503
    %v505 = vrot.slane %v504, 1
    %v506 = vadd.f32 %v504, %v505
    %v507 = vmul.f32 %v506, 0.03125
    %v508 = vsub.f32 %v490, %v507
    %v509 = vsub.f32 %v491, %v507
    %v510 = vsub.f32 %v492, %v507
    %v511 = vsub.f32 %v493, %v507
    %v512 = vmul.f32 %v508, %v508
    %v513 = vmul.f32 %v509, %v509
    %v514 = vmul.f32 %v510, %v510
    %v515 = vmul.f32 %v511, %v511
    %v516 = vadd.f32 %v512, %v513
    %v517 = vadd.f32 %v516, %v514
    %v518 = vadd.f32 %v517, %v515
    %v519 = vrot.slane %v518, 4
    %v520 = vadd.f32 %v518, %v519
    %v521 = vrot.slane %v520, 2
    %v522 = vadd.f32 %v520, %v521
    %v523 = vrot.slane %v522, 1
    %v524 = vadd.f32 %v522, %v523
    %v525 = vsel %vm241, %v506, %v524
    %526 = vst [vmem:[#allocation11] sm:$0x3] %v525
    %v527 = vld [vmem:[#allocation7] sm:$0xff]
    %v528 = vld [vmem:[#allocation7 + $0x8] sm:$0xff]
    %v529 = vld [vmem:[#allocation7 + $0x10] sm:$0xff]
    %v530 = vld [vmem:[#allocation7 + $0x18] sm:$0xff]
    %v531 = vld [vmem:[#allocation7 + $0x20] sm:$0xff]
    %v532 = vld [vmem:[#allocation7 + $0x28] sm:$0xff]
    %v533 = vld [vmem:[#allocation7 + $0x30] sm:$0xff]
    %v534 = vld [vmem:[#allocation7 + $0x38] sm:$0xff]
    %v535 = vld [vmem:[#allocation7 + $0x40] sm:$0xff]
    %v536 = vld [vmem:[#allocation7 + $0x48] sm:$0xff]
    %v537 = vld [vmem:[#allocation7 + $0x50] sm:$0xff]
    %v538 = vld [vmem:[#allocation7 + $0x58] sm:$0xff]
    %v539 = vld [vmem:[#allocation7 + $0x60] sm:$0xff]
    %v540 = vld [vmem:[#allocation7 + $0x68] sm:$0xff]
    %v541 = vld [vmem:[#allocation7 + $0x70] sm:$0xff]
    %v542 = vld [vmem:[#allocation7 + $0x78] sm:$0xff]
    %543 = vmatprep.subr.mxu0 0.0
    %544 = vmatpush1.msra.mxu0 %v527
    %545 = vmatprep.subr.mxu0 0.0
    %546 = vmatpush1.msra.mxu0 %v528
    %547 = vmatprep.subr.mxu0 0.0
    %548 = vmatpush1.msra.mxu0 %v529
    %549 = vmatprep.subr.mxu0 0.0
    %550 = vmatpush1.msra.mxu0 %v530
    %551 = vmatprep.subr.mxu0 0.0
    %552 = vmatpush1.msra.mxu0 %v531
    %553 = vmatprep.subr.mxu0 0.0
    %554 = vmatpush1.msra.mxu0 %v532
    %555 = vmatprep.subr.mxu0 0.0
    %556 = vmatpush1.msra.mxu0 %v533
    %557 = vmatprep.subr.mxu0 0.0
    %558 = vmatpush1.msra.mxu0 %v534
    %559 = vmatprep.subr.mxu0 0.0
    %560 = vmatpush1.msra.mxu0 %v535
    %561 = vmatprep.subr.mxu0 0.0
    %562 = vmatpush1.msra.mxu0 %v536
    %563 = vmatprep.subr.mxu0 0.0
    %564 = vmatpush1.msra.mxu0 %v537
    %565 = vmatprep.subr.mxu0 0.0
    %566 = vmatpush1.msra.mxu0 %v538
    %567 = vmatprep.subr.mxu0 0.0
    %568 = vmatpush1.msra.mxu0 %v539
    %569 = vmatprep.subr.mxu0 0.0
    %570 = vmatpush1.msra.mxu0 %v540
    %571 = vmatprep.subr.mxu0 0.0
    %572 = vmatpush1.msra.mxu0 %v541
    %573 = vmatprep.subr.mxu0 0.0
    %574 = vmatpush1.msra.mxu0 %v542
    %575 = vmatprep.subr.mxu0 0.0
    %576 = vmatpush1.msra.mxu0 0.0
    %577 = vmatprep.subr.mxu0 0.0
    %578 = vmatpush1.msra.mxu0 0.0
    %579 = vmatprep.subr.mxu0 0.0
    %580 = vmatpush1.msra.mxu0 0.0
    %581 = vmatprep.subr.mxu0 0.0
    %582 = vmatpush1.msra.mxu0 0.0
    %583 = vmatprep.subr.mxu0 0.0
    %584 = vmatpush1.msra.mxu0 0.0
    %585 = vmatprep.subr.mxu0 0.0
    %586 = vmatpush1.msra.mxu0 0.0
    %587 = vmatprep.subr.mxu0 0.0
    %588 = vmatpush1.msra.mxu0 0.0
    %589 = vmatprep.subr.mxu0 0.0
    %590 = vmatpush1.msra.mxu0 0.0
    %591 = vmatprep.subr.mxu0 0.0
    %592 = vmatpush1.msra.mxu0 0.0
    %593 = vmatprep.subr.mxu0 0.0
    %594 = vmatpush1.msra.mxu0 0.0
    %595 = vmatprep.subr.mxu0 0.0
    %596 = vmatpush1.msra.mxu0 0.0
    %597 = vmatprep.subr.mxu0 0.0
    %598 = vmatpush1.msra.mxu0 0.0
    %599 = vmatprep.subr.mxu0 0.0
    %600 = vmatpush1.msra.mxu0 0.0
    %601 = vmatprep.subr.mxu0 0.0
    %602 = vmatpush1.msra.mxu0 0.0
    %603 = vmatprep.subr.mxu0 0.0
    %604 = vmatpush1.msra.mxu0 0.0
    %605 = vmatprep.subr.mxu0 0.0
    %606 = vmatpush1.msra.mxu0 0.0
    %607 = vmatprep.mubr.f32.mxu0 0.0
    %608 = vmatmul.mubr.f32.gmra.mrb[0].mxu0 %v62
    %v609 = vpop.f32.mrb[0].mxu0
    %v610 = vadd.f32 0.0, %v609
    %v611 = vpop.f32.mrb[0].mxu0
    %612 = vmatprep.mubr.f32.mxu0 0.0
    %613 = vmatmul.mubr.f32.gmra.mrb[0].mxu0 %v63
    %v614 = vpop.f32.mrb[0].mxu0
    %v615 = vadd.f32 0.0, %v614
    %v616 = vpop.f32.mrb[0].mxu0
    %617 = vmatprep.mubr.f32.mxu0 0.0
    %618 = vmatmul.mubr.f32.gmra.mrb[0].mxu0 %v64
    %v619 = vpop.f32.mrb[0].mxu0
    %v620 = vadd.f32 0.0, %v619
    %v621 = vpop.f32.mrb[0].mxu0
    %622 = vmatprep.mubr.f32.mxu0 0.0
    %623 = vmatmul.mubr.f32.gmra.mrb[0].mxu0 %v65
    %v624 = vpop.f32.mrb[0].mxu0
    %v625 = vadd.f32 0.0, %v624
    %v626 = vpop.f32.mrb[0].mxu0
    %627 = vdwg.mxu0
    %628 = vst [vmem:[#allocation9] sm:$0xff] %v610
    %629 = vst [vmem:[#allocation9 + $0x8] sm:$0xff] %v615
    %630 = vst [vmem:[#allocation9 + $0x10] sm:$0xff] %v620
    %631 = vst [vmem:[#allocation9 + $0x18] sm:$0xff] %v625
    %v632 = vadd.f32 %v610, %v615
    %v633 = vadd.f32 %v632, %v620
    %v634 = vadd.f32 %v633, %v625
    %v635 = vrot.slane %v634, 4
    %v636 = vadd.f32 %v634, %v635
    %v637 = vrot.slane %v636, 2
    %v638 = vadd.f32 %v636, %v637
    %v639 = vrot.slane %v638, 1
    %v640 = vadd.f32 %v638, %v639
    %v641 = vmul.f32 %v640, 0.03125
    %v642 = vsub.f32 %v610, %v641
    %v643 = vsub.f32 %v615, %v641
    %v644 = vsub.f32 %v620, %v641
    %v645 = vsub.f32 %v625, %v641
    %v646 = vmul.f32 %v642, %v642
    %v647 = vmul.f32 %v643, %v643
    %v648 = vmul.f32 %v644, %v644
    %v649 = vmul.f32 %v645, %v645
    %v650 = vadd.f32 %v646, %v647
    %v651 = vadd.f32 %v650, %v648
    %v652 = vadd.f32 %v651, %v649
    %v653 = vrot.slane %v652, 4
    %v654 = vadd.f32 %v652, %v653
    %v655 = vrot.slane %v654, 2
    %v656 = vadd.f32 %v654, %v655
    %v657 = vrot.slane %v656, 1
    %v658 = vadd.f32 %v656, %v657
    %v659 = vsel %vm241, %v640, %v658
    %660 = vst [vmem:[#allocation12] sm:$0x3] %v659
    // Predicated region
    $region26: #{_residual_block_impl.3} parent=1 // pred_check
      _
    $region27: #{_residual_block_impl.3} parent=1 // pred_check_branch
      %662 = sbr.rel (0) target = $region29
    $region28: #{_residual_block_impl.3} parent=1 // pred_region
      %s664 = ssub.s32 512, 512
      %665 = vsyncadd [#allocation4], %s664
      %s666 = sshll.u32 [#allocation8], 4
      %s667 = int_to_ptr.vmem [resolvable:$true] %s666
      %672 = dma.vmem_to_hbm [thread:$0]  %s667, 512, %s3, [#allocation4], 128, 128, 8
    $region29: #{_residual_block_impl.3} parent=1 // pred_fallthru
      _
    // Predicated region
    $region30: #{_residual_block_impl.3} parent=1 // pred_check
      _
    $region31: #{_residual_block_impl.3} parent=1 // pred_check_branch
      %674 = sbr.rel (0) target = $region33
    $region32: #{_residual_block_impl.3} parent=1 // pred_region
      %s676 = ssub.s32 512, 512
      %677 = vsyncadd [#allocation10], %s676
      %s678 = sshll.u32 [#allocation9], 4
      %s679 = int_to_ptr.vmem [resolvable:$true] %s678
      %684 = dma.vmem_to_hbm [thread:$0]  %s679, 512, %s4, [#allocation10], 128, 128, 8
    $region33: #{_residual_block_impl.3} parent=1 // pred_fallthru
      _
    // Predicated region
    $region34: #{_residual_block_impl.3} parent=1 // pred_check
      _
    $region35: #{_residual_block_impl.3} parent=1 // pred_check_branch
      %686 = sbr.rel (0) target = $region37
    $region36: #{_residual_block_impl.3} parent=1 // pred_region
      %s688 = ssub.s32 32, 32
      %689 = vsyncadd [#allocation10], %s688
      %s691 = sshll.u32 [#allocation11], 4
      %s692 = int_to_ptr.vmem [resolvable:$true] %s691
      %694 = dma.vmem_to_hbm [thread:$0]  %s692, 32, %s5, [#allocation10]
    $region37: #{_residual_block_impl.3} parent=1 // pred_fallthru
      _
    // Predicated region
    $region38: #{_residual_block_impl.3} parent=1 // pred_check
      _
    $region39: #{_residual_block_impl.3} parent=1 // pred_check_branch
      %696 = sbr.rel (0) target = $region41
    $region40: #{_residual_block_impl.3} parent=1 // pred_region
      %s698 = ssub.s32 32, 32
      %699 = vsyncadd [#allocation13], %s698
      %s701 = sshll.u32 [#allocation12], 4
      %s702 = int_to_ptr.vmem [resolvable:$true] %s701
      %704 = dma.vmem_to_hbm [thread:$0]  %s702, 32, %s6, [#allocation13]
    $region41: #{_residual_block_impl.3} parent=1 // pred_fallthru
      _
    // Predicated region
    $region42: #{_residual_block_impl.3} parent=1 // pred_check
      _
    $region43: #{_residual_block_impl.3} parent=1 // pred_check_branch
      %706 = sbr.rel (0) target = $region45
    $region44: #{_residual_block_impl.3} parent=1 // pred_region
      %707 = dma.done [#allocation4], 512
    $region45: #{_residual_block_impl.3} parent=1 // pred_fallthru
      _
    // Predicated region
    $region46: #{_residual_block_impl.3} parent=1 // pred_check
      _
    $region47: #{_residual_block_impl.3} parent=1 // pred_check_branch
      %709 = sbr.rel (0) target = $region49
    $region48: #{_residual_block_impl.3} parent=1 // pred_region
      %710 = dma.done [#allocation10], 512
    $region49: #{_residual_block_impl.3} parent=1 // pred_fallthru
      _
    // Predicated region
    $region50: #{_residual_block_impl.3} parent=1 // pred_check
      _
    $region51: #{_residual_block_impl.3} parent=1 // pred_check_branch
      %712 = sbr.rel (0) target = $region53
    $region52: #{_residual_block_impl.3} parent=1 // pred_region
      %713 = dma.done [#allocation10], 32
    $region53: #{_residual_block_impl.3} parent=1 // pred_fallthru
      _
    // Predicated region
    $region54: #{_residual_block_impl.3} parent=1 // pred_check
      _
    $region55: #{_residual_block_impl.3} parent=1 // pred_check_branch
      %715 = sbr.rel (0) target = $region57
    $region56: #{_residual_block_impl.3} parent=1 // pred_region
      %716 = dma.done [#allocation13], 32
    $region57: #{_residual_block_impl.3} parent=1 // pred_fallthru
      _
    %717 = vsyncpa [#allocation3], 1
    %718 = vsyncpa [#allocation6], 1
    %719 = vsyncpa [#allocation4], 1
    %720 = vsyncpa [#allocation10], 1
    %721 = vsyncpa [#allocation13], 1

</llo_original>
